<compile_context>
chip_gen: v7x
topology: tpu7x:2x2x1
jax: 0.10.0
libtpu: 0.0.40
codegen_flags: <defaults>
</compile_context>

<pallas_src>
import math
import jax
import jax.numpy as jnp
from jax import lax
from jax.experimental import pallas as pl
from jax.experimental.pallas import tpu as pltpu

INPUT_SIZE = 10
HIDDEN = 20
FC1, FC2, FC3 = 64, 32, 5


def qlstm_ids_forward(x, params):
    """x: (B, T, I) batch-first, like the PyTorch module.  Returns (B, 5)."""
    wih4, whh4, b4, w1, b1, w2, b2, w3, b3 = params
    B, T, I = x.shape
    H = HIDDEN
    H4 = 4 * H

    # Time-major, flattened input so each step's slab is a contiguous row block.
    # (640 B transpose outside the kernel -- negligible.)
    xf = jnp.transpose(x, (1, 0, 2)).reshape(T * B, I)

    def kernel(xf_ref, wih4_ref, whh4_ref, b4_ref,
               w1_ref, b1_ref, w2_ref, b2_ref, w3_ref, b3_ref,
               out_ref, xw_scr):
        # Lane mask that doubles the g-gate columns so a single sigmoid over the fused
        # (., 4H) block yields all four gates: tanh(z) = 2*sigmoid(2z) - 1 (exact scaling).
        col = lax.broadcasted_iota(jnp.int32, (1, H4), 1)
        g_scale = jnp.where((col >= 2 * H) & (col < 3 * H), 2.0, 1.0).astype(jnp.float32)

        # Input projection for ALL time steps at once (independent of the recurrence):
        # one (T*B, I) x (I, 4H) MXU push instead of one per step.
        xw = jnp.dot(xf_ref[...], wih4_ref[...],
                     preferred_element_type=jnp.float32) + b4_ref[...]
        xw_scr[...] = xw * g_scale                    # (T*B, 4H), staged in VMEM
        whh4 = whh4_ref[...] * g_scale                # (H, 4H), g columns pre-doubled

        h = jnp.zeros((B, H), jnp.float32)
        c = jnp.zeros((B, H), jnp.float32)

        # Short fixed trip count -> fully unrolled; h/c stay in vregs across steps.
        for t in range(T):
            z = xw_scr[t * B:(t + 1) * B, :] + jnp.dot(
                h, whh4, preferred_element_type=jnp.float32)       # (B, 4H)
            s = jax.nn.sigmoid(z)                                   # one EUP block for all gates
            i_g = s[:, 0:H]
            f_g = s[:, H:2 * H]
            g_g = 2.0 * s[:, 2 * H:3 * H] - 1.0                     # = tanh(g pre-activation)
            o_g = s[:, 3 * H:4 * H]
            c = f_g * c + i_g * g_g
            h = o_g * jnp.tanh(c)

        # Fused MLP head on the final hidden state hn[-1, :, :].
        a = jnp.maximum(h, 0.0)            # Dropout(eval) = identity, QuantReLU -> relu
        a = jnp.maximum(jnp.dot(a, w1_ref[...],
                                preferred_element_type=jnp.float32) + b1_ref[...], 0.0)
        a = jnp.maximum(jnp.dot(a, w2_ref[...],
                                preferred_element_type=jnp.float32) + b2_ref[...], 0.0)
        out_ref[...] = jnp.dot(a, w3_ref[...],
                               preferred_element_type=jnp.float32) + b3_ref[...]

    return pl.pallas_call(
        kernel,
        out_shape=jax.ShapeDtypeStruct((B, FC3), jnp.float32),
        scratch_shapes=[pltpu.VMEM((T * B, H4), jnp.float32)],  # pre-projected gates
    )(xf, wih4, whh4, b4, w1, b1, w2, b2, w3, b3)


def reference_forward(x, params):
    """Pure-JAX reference of the same forward pass (for a correctness check)."""
    wih4, whh4, b4, w1, b1, w2, b2, w3, b3 = params
    B, T, I = x.shape
    H = HIDDEN

    def step(carry, x_t):
        h, c = carry
        z = x_t @ wih4 + h @ whh4 + b4          # (B, 4H), gate order i,f,g,o
        i = jax.nn.sigmoid(z[:, 0:H])
        f = jax.nn.sigmoid(z[:, H:2 * H])
        g = jnp.tanh(z[:, 2 * H:3 * H])
        o = jax.nn.sigmoid(z[:, 3 * H:4 * H])
        c = f * c + i * g
        h = o * jnp.tanh(c)
        return (h, c), None

    init = (jnp.zeros((B, H), jnp.float32), jnp.zeros((B, H), jnp.float32))
    (h, _), _ = lax.scan(step, init, jnp.transpose(x, (1, 0, 2)))
    a = jnp.maximum(h, 0.0)
    a = jnp.maximum(a @ w1 + b1, 0.0)
    a = jnp.maximum(a @ w2 + b2, 0.0)
    return a @ w3 + b3


def make_params(key):
    """Deterministic parameter init (PyTorch-style uniform(-1/sqrt(H), 1/sqrt(H))).

    LSTM weights are stored fused and pre-transposed for right-multiplication:
    wih4 (I, 4H), whh4 (H, 4H), b4 (1, 4H) with gate order [i, f, g, o] along 4H
    (b4 corresponds to b_ih + b_hh of the PyTorch layout).
    """
    ks = jax.random.split(key, 9)
    bound = 1.0 / math.sqrt(HIDDEN)
    u = lambda k, shape, b: jax.random.uniform(k, shape, jnp.float32, minval=-b, maxval=b)
    wih4 = u(ks[0], (INPUT_SIZE, 4 * HIDDEN), bound)
    whh4 = u(ks[1], (HIDDEN, 4 * HIDDEN), bound)
    b4   = u(ks[2], (1, 4 * HIDDEN), bound)
    w1 = u(ks[3], (HIDDEN, FC1), 1.0 / math.sqrt(HIDDEN))
    b1 = u(ks[4], (1, FC1),      1.0 / math.sqrt(HIDDEN))
    w2 = u(ks[5], (FC1, FC2),    1.0 / math.sqrt(FC1))
    b2 = u(ks[6], (1, FC2),      1.0 / math.sqrt(FC1))
    w3 = u(ks[7], (FC2, FC3),    1.0 / math.sqrt(FC2))
    b3 = u(ks[8], (1, FC3),      1.0 / math.sqrt(FC2))
    return (wih4, whh4, b4, w1, b1, w2, b2, w3, b3)


if __name__ == "__main__":
    key = jax.random.PRNGKey(0)
    k_x, k_p = jax.random.split(key)

    B, T = 2, 8                          # batch=2, seq=8, features=10 (input_size of QuantLSTM)
    x = jax.random.normal(k_x, (B, T, INPUT_SIZE), dtype=jnp.float32)
    params = make_params(k_p)

    out = qlstm_ids_forward(x, params)
    out = jax.block_until_ready(out)

    ref = jax.block_until_ready(reference_forward(x, params))
    assert out.shape == (B, FC3)
    assert jnp.allclose(out, ref, rtol=1e-4, atol=1e-4), "mismatch vs JAX reference"

    print("KERNEL_OK")
</pallas_src>

<mosaic_0001>
module attributes {stable_mosaic.version = 11 : i64} {
  func.func @kernel(%arg0: memref<16x10xf32, #tpu.memory_space<vmem>>, %arg1: memref<10x80xf32, #tpu.memory_space<vmem>>, %arg2: memref<20x80xf32, #tpu.memory_space<vmem>>, %arg3: memref<1x80xf32, #tpu.memory_space<vmem>>, %arg4: memref<20x64xf32, #tpu.memory_space<vmem>>, %arg5: memref<1x64xf32, #tpu.memory_space<vmem>>, %arg6: memref<64x32xf32, #tpu.memory_space<vmem>>, %arg7: memref<1x32xf32, #tpu.memory_space<vmem>>, %arg8: memref<32x5xf32, #tpu.memory_space<vmem>>, %arg9: memref<1x5xf32, #tpu.memory_space<vmem>>, %arg10: memref<2x5xf32, #tpu.memory_space<vmem>>, %arg11: memref<16x80xf32, #tpu.memory_space<vmem>>) attributes {dimension_semantics = [], scalar_prefetch = 0 : i64, scratch_operands = 1 : i64, tpu.core_type = #tpu.core_type<tc>} {
    %0 = tpu.iota {dimensions = array<i32: 1>} : vector<1x80xi32>
    %c40_i32 = arith.constant 40 : i32
    %1 = vector.broadcast %c40_i32 : i32 to vector<1x80xi32>
    %2 = arith.cmpi sge, %0, %1 : vector<1x80xi32>
    %c60_i32 = arith.constant 60 : i32
    %3 = vector.broadcast %c60_i32 : i32 to vector<1x80xi32>
    %4 = arith.cmpi slt, %0, %3 : vector<1x80xi32>
    %5 = arith.andi %2, %4 : vector<1x80xi1>
    %cst = arith.constant 2.000000e+00 : f32
    %cst_0 = arith.constant 1.000000e+00 : f32
    %6 = vector.broadcast %cst : f32 to vector<1x80xf32>
    %7 = vector.broadcast %cst_0 : f32 to vector<1x80xf32>
    %8 = arith.select %5, %6, %7 : vector<1x80xi1>, vector<1x80xf32>
    %c0 = arith.constant 0 : index
    %c0_1 = arith.constant 0 : index
    %9 = vector.load %arg0[%c0, %c0_1] : memref<16x10xf32, #tpu.memory_space<vmem>>, vector<16x10xf32>
    %c0_2 = arith.constant 0 : index
    %c0_3 = arith.constant 0 : index
    %10 = vector.load %arg1[%c0_2, %c0_3] : memref<10x80xf32, #tpu.memory_space<vmem>>, vector<10x80xf32>
    %cst_4 = arith.constant dense<0.000000e+00> : vector<16x80xf32>
    %11 = tpu.matmul %9, %10, %cst_4 {dimension_numbers = #tpu.dot_dimension_numbers<[1], [0], [0], [1], [0, 0, 1, 1], [], []>} : vector<16x10xf32>, vector<10x80xf32>, vector<16x80xf32> -> vector<16x80xf32>
    %c0_5 = arith.constant 0 : index
    %c0_6 = arith.constant 0 : index
    %12 = vector.load %arg3[%c0_5, %c0_6] : memref<1x80xf32, #tpu.memory_space<vmem>>, vector<1x80xf32>
    %13 = vector.broadcast %12 : vector<1x80xf32> to vector<16x80xf32>
    %14 = arith.addf %11, %13 : vector<16x80xf32>
    %15 = vector.broadcast %8 : vector<1x80xf32> to vector<16x80xf32>
    %16 = arith.mulf %14, %15 : vector<16x80xf32>
    %c0_7 = arith.constant 0 : index
    %c0_8 = arith.constant 0 : index
    %17 = vector.load %arg11[%c0_7, %c0_8] : memref<16x80xf32, #tpu.memory_space<vmem>>, vector<16x80xf32>
    tpu.vector_store %arg11[%c0_7, %c0_8], %16 {strides = array<i32>} : memref<16x80xf32, #tpu.memory_space<vmem>>, vector<16x80xf32>,
    %c0_9 = arith.constant 0 : index
    %c0_10 = arith.constant 0 : index
    %18 = vector.load %arg2[%c0_9, %c0_10] : memref<20x80xf32, #tpu.memory_space<vmem>>, vector<20x80xf32>
    %19 = vector.broadcast %8 : vector<1x80xf32> to vector<20x80xf32>
    %20 = arith.mulf %18, %19 : vector<20x80xf32>
    %cst_11 = arith.constant 0.000000e+00 : f32
    %21 = vector.broadcast %cst_11 : f32 to vector<2x20xf32>
    %cst_12 = arith.constant 0.000000e+00 : f32
    %22 = vector.broadcast %cst_12 : f32 to vector<2x20xf32>
    %c0_13 = arith.constant 0 : index
    %c0_14 = arith.constant 0 : index
    %23 = vector.load %arg11[%c0_13, %c0_14] : memref<16x80xf32, #tpu.memory_space<vmem>>, vector<2x80xf32>
    %cst_15 = arith.constant dense<0.000000e+00> : vector<2x80xf32>
    %24 = tpu.matmul %21, %20, %cst_15 {dimension_numbers = #tpu.dot_dimension_numbers<[1], [0], [0], [1], [0, 0, 1, 1], [], []>} : vector<2x20xf32>, vector<20x80xf32>, vector<2x80xf32> -> vector<2x80xf32>
    %25 = arith.addf %23, %24 : vector<2x80xf32>
    %26 = arith.negf %25 : vector<2x80xf32>
    %27 = math.exp %26 : vector<2x80xf32>
    %cst_16 = arith.constant 1.000000e+00 : f32
    %28 = vector.broadcast %cst_16 : f32 to vector<2x80xf32>
    %29 = arith.addf %28, %27 : vector<2x80xf32>
    %30 = arith.divf %28, %29 : vector<2x80xf32>
    %31 = vector.extract_strided_slice %30 {offsets = [0, 0], sizes = [2, 20], strides = [1, 1]} : vector<2x80xf32> to vector<2x20xf32>
    %32 = vector.extract_strided_slice %30 {offsets = [0, 20], sizes = [2, 20], strides = [1, 1]} : vector<2x80xf32> to vector<2x20xf32>
    %33 = vector.extract_strided_slice %30 {offsets = [0, 40], sizes = [2, 20], strides = [1, 1]} : vector<2x80xf32> to vector<2x20xf32>
    %cst_17 = arith.constant 2.000000e+00 : f32
    %34 = vector.broadcast %cst_17 : f32 to vector<2x20xf32>
    %35 = arith.mulf %34, %33 : vector<2x20xf32>
    %cst_18 = arith.constant 1.000000e+00 : f32
    %36 = vector.broadcast %cst_18 : f32 to vector<2x20xf32>
    %37 = arith.subf %35, %36 : vector<2x20xf32>
    %38 = vector.extract_strided_slice %30 {offsets = [0, 60], sizes = [2, 20], strides = [1, 1]} : vector<2x80xf32> to vector<2x20xf32>
    %39 = arith.mulf %32, %22 : vector<2x20xf32>
    %40 = arith.mulf %31, %37 : vector<2x20xf32>
    %41 = arith.addf %39, %40 : vector<2x20xf32>
    %42 = math.tanh %41 : vector<2x20xf32>
    %43 = arith.mulf %38, %42 : vector<2x20xf32>
    %c2 = arith.constant 2 : index
    %c0_19 = arith.constant 0 : index
    %44 = vector.load %arg11[%c2, %c0_19] : memref<16x80xf32, #tpu.memory_space<vmem>>, vector<2x80xf32>
    %cst_20 = arith.constant dense<0.000000e+00> : vector<2x80xf32>
    %45 = tpu.matmul %43, %20, %cst_20 {dimension_numbers = #tpu.dot_dimension_numbers<[1], [0], [0], [1], [0, 0, 1, 1], [], []>} : vector<2x20xf32>, vector<20x80xf32>, vector<2x80xf32> -> vector<2x80xf32>
    %46 = arith.addf %44, %45 : vector<2x80xf32>
    %47 = arith.negf %46 : vector<2x80xf32>
    %48 = math.exp %47 : vector<2x80xf32>
    %cst_21 = arith.constant 1.000000e+00 : f32
    %49 = vector.broadcast %cst_21 : f32 to vector<2x80xf32>
    %50 = arith.addf %49, %48 : vector<2x80xf32>
    %51 = arith.divf %49, %50 : vector<2x80xf32>
    %52 = vector.extract_strided_slice %51 {offsets = [0, 0], sizes = [2, 20], strides = [1, 1]} : vector<2x80xf32> to vector<2x20xf32>
    %53 = vector.extract_strided_slice %51 {offsets = [0, 20], sizes = [2, 20], strides = [1, 1]} : vector<2x80xf32> to vector<2x20xf32>
    %54 = vector.extract_strided_slice %51 {offsets = [0, 40], sizes = [2, 20], strides = [1, 1]} : vector<2x80xf32> to vector<2x20xf32>
    %cst_22 = arith.constant 2.000000e+00 : f32
    %55 = vector.broadcast %cst_22 : f32 to vector<2x20xf32>
    %56 = arith.mulf %55, %54 : vector<2x20xf32>
    %cst_23 = arith.constant 1.000000e+00 : f32
    %57 = vector.broadcast %cst_23 : f32 to vector<2x20xf32>
    %58 = arith.subf %56, %57 : vector<2x20xf32>
    %59 = vector.extract_strided_slice %51 {offsets = [0, 60], sizes = [2, 20], strides = [1, 1]} : vector<2x80xf32> to vector<2x20xf32>
    %60 = arith.mulf %53, %41 : vector<2x20xf32>
    %61 = arith.mulf %52, %58 : vector<2x20xf32>
    %62 = arith.addf %60, %61 : vector<2x20xf32>
    %63 = math.tanh %62 : vector<2x20xf32>
    %64 = arith.mulf %59, %63 : vector<2x20xf32>
    %c4 = arith.constant 4 : index
    %c0_24 = arith.constant 0 : index
    %65 = vector.load %arg11[%c4, %c0_24] : memref<16x80xf32, #tpu.memory_space<vmem>>, vector<2x80xf32>
    %cst_25 = arith.constant dense<0.000000e+00> : vector<2x80xf32>
    %66 = tpu.matmul %64, %20, %cst_25 {dimension_numbers = #tpu.dot_dimension_numbers<[1], [0], [0], [1], [0, 0, 1, 1], [], []>} : vector<2x20xf32>, vector<20x80xf32>, vector<2x80xf32> -> vector<2x80xf32>
    %67 = arith.addf %65, %66 : vector<2x80xf32>
    %68 = arith.negf %67 : vector<2x80xf32>
    %69 = math.exp %68 : vector<2x80xf32>
    %cst_26 = arith.constant 1.000000e+00 : f32
    %70 = vector.broadcast %cst_26 : f32 to vector<2x80xf32>
    %71 = arith.addf %70, %69 : vector<2x80xf32>
    %72 = arith.divf %70, %71 : vector<2x80xf32>
    %73 = vector.extract_strided_slice %72 {offsets = [0, 0], sizes = [2, 20], strides = [1, 1]} : vector<2x80xf32> to vector<2x20xf32>
    %74 = vector.extract_strided_slice %72 {offsets = [0, 20], sizes = [2, 20], strides = [1, 1]} : vector<2x80xf32> to vector<2x20xf32>
    %75 = vector.extract_strided_slice %72 {offsets = [0, 40], sizes = [2, 20], strides = [1, 1]} : vector<2x80xf32> to vector<2x20xf32>
    %cst_27 = arith.constant 2.000000e+00 : f32
    %76 = vector.broadcast %cst_27 : f32 to vector<2x20xf32>
    %77 = arith.mulf %76, %75 : vector<2x20xf32>
    %cst_28 = arith.constant 1.000000e+00 : f32
    %78 = vector.broadcast %cst_28 : f32 to vector<2x20xf32>
    %79 = arith.subf %77, %78 : vector<2x20xf32>
    %80 = vector.extract_strided_slice %72 {offsets = [0, 60], sizes = [2, 20], strides = [1, 1]} : vector<2x80xf32> to vector<2x20xf32>
    %81 = arith.mulf %74, %62 : vector<2x20xf32>
    %82 = arith.mulf %73, %79 : vector<2x20xf32>
    %83 = arith.addf %81, %82 : vector<2x20xf32>
    %84 = math.tanh %83 : vector<2x20xf32>
    %85 = arith.mulf %80, %84 : vector<2x20xf32>
    %c6 = arith.constant 6 : index
    %c0_29 = arith.constant 0 : index
    %86 = vector.load %arg11[%c6, %c0_29] : memref<16x80xf32, #tpu.memory_space<vmem>>, vector<2x80xf32>
    %cst_30 = arith.constant dense<0.000000e+00> : vector<2x80xf32>
    %87 = tpu.matmul %85, %20, %cst_30 {dimension_numbers = #tpu.dot_dimension_numbers<[1], [0], [0], [1], [0, 0, 1, 1], [], []>} : vector<2x20xf32>, vector<20x80xf32>, vector<2x80xf32> -> vector<2x80xf32>
    %88 = arith.addf %86, %87 : vector<2x80xf32>
    %89 = arith.negf %88 : vector<2x80xf32>
    %90 = math.exp %89 : vector<2x80xf32>
    %cst_31 = arith.constant 1.000000e+00 : f32
    %91 = vector.broadcast %cst_31 : f32 to vector<2x80xf32>
    %92 = arith.addf %91, %90 : vector<2x80xf32>
    %93 = arith.divf %91, %92 : vector<2x80xf32>
    %94 = vector.extract_strided_slice %93 {offsets = [0, 0], sizes = [2, 20], strides = [1, 1]} : vector<2x80xf32> to vector<2x20xf32>
    %95 = vector.extract_strided_slice %93 {offsets = [0, 20], sizes = [2, 20], strides = [1, 1]} : vector<2x80xf32> to vector<2x20xf32>
    %96 = vector.extract_strided_slice %93 {offsets = [0, 40], sizes = [2, 20], strides = [1, 1]} : vector<2x80xf32> to vector<2x20xf32>
    %cst_32 = arith.constant 2.000000e+00 : f32
    %97 = vector.broadcast %cst_32 : f32 to vector<2x20xf32>
    %98 = arith.mulf %97, %96 : vector<2x20xf32>
    %cst_33 = arith.constant 1.000000e+00 : f32
    %99 = vector.broadcast %cst_33 : f32 to vector<2x20xf32>
    %100 = arith.subf %98, %99 : vector<2x20xf32>
    %101 = vector.extract_strided_slice %93 {offsets = [0, 60], sizes = [2, 20], strides = [1, 1]} : vector<2x80xf32> to vector<2x20xf32>
    %102 = arith.mulf %95, %83 : vector<2x20xf32>
    %103 = arith.mulf %94, %100 : vector<2x20xf32>
    %104 = arith.addf %102, %103 : vector<2x20xf32>
    %105 = math.tanh %104 : vector<2x20xf32>
    %106 = arith.mulf %101, %105 : vector<2x20xf32>
    %c8 = arith.constant 8 : index
    %c0_34 = arith.constant 0 : index
    %107 = vector.load %arg11[%c8, %c0_34] : memref<16x80xf32, #tpu.memory_space<vmem>>, vector<2x80xf32>
    %cst_35 = arith.constant dense<0.000000e+00> : vector<2x80xf32>
    %108 = tpu.matmul %106, %20, %cst_35 {dimension_numbers = #tpu.dot_dimension_numbers<[1], [0], [0], [1], [0, 0, 1, 1], [], []>} : vector<2x20xf32>, vector<20x80xf32>, vector<2x80xf32> -> vector<2x80xf32>
    %109 = arith.addf %107, %108 : vector<2x80xf32>
    %110 = arith.negf %109 : vector<2x80xf32>
    %111 = math.exp %110 : vector<2x80xf32>
    %cst_36 = arith.constant 1.000000e+00 : f32
    %112 = vector.broadcast %cst_36 : f32 to vector<2x80xf32>
    %113 = arith.addf %112, %111 : vector<2x80xf32>
    %114 = arith.divf %112, %113 : vector<2x80xf32>
    %115 = vector.extract_strided_slice %114 {offsets = [0, 0], sizes = [2, 20], strides = [1, 1]} : vector<2x80xf32> to vector<2x20xf32>
    %116 = vector.extract_strided_slice %114 {offsets = [0, 20], sizes = [2, 20], strides = [1, 1]} : vector<2x80xf32> to vector<2x20xf32>
    %117 = vector.extract_strided_slice %114 {offsets = [0, 40], sizes = [2, 20], strides = [1, 1]} : vector<2x80xf32> to vector<2x20xf32>
    %cst_37 = arith.constant 2.000000e+00 : f32
    %118 = vector.broadcast %cst_37 : f32 to vector<2x20xf32>
    %119 = arith.mulf %118, %117 : vector<2x20xf32>
    %cst_38 = arith.constant 1.000000e+00 : f32
    %120 = vector.broadcast %cst_38 : f32 to vector<2x20xf32>
    %121 = arith.subf %119, %120 : vector<2x20xf32>
    %122 = vector.extract_strided_slice %114 {offsets = [0, 60], sizes = [2, 20], strides = [1, 1]} : vector<2x80xf32> to vector<2x20xf32>
    %123 = arith.mulf %116, %104 : vector<2x20xf32>
    %124 = arith.mulf %115, %121 : vector<2x20xf32>
    %125 = arith.addf %123, %124 : vector<2x20xf32>
    %126 = math.tanh %125 : vector<2x20xf32>
    %127 = arith.mulf %122, %126 : vector<2x20xf32>
    %c10 = arith.constant 10 : index
    %c0_39 = arith.constant 0 : index
    %128 = vector.load %arg11[%c10, %c0_39] : memref<16x80xf32, #tpu.memory_space<vmem>>, vector<2x80xf32>
    %cst_40 = arith.constant dense<0.000000e+00> : vector<2x80xf32>
    %129 = tpu.matmul %127, %20, %cst_40 {dimension_numbers = #tpu.dot_dimension_numbers<[1], [0], [0], [1], [0, 0, 1, 1], [], []>} : vector<2x20xf32>, vector<20x80xf32>, vector<2x80xf32> -> vector<2x80xf32>
    %130 = arith.addf %128, %129 : vector<2x80xf32>
    %131 = arith.negf %130 : vector<2x80xf32>
    %132 = math.exp %131 : vector<2x80xf32>
    %cst_41 = arith.constant 1.000000e+00 : f32
    %133 = vector.broadcast %cst_41 : f32 to vector<2x80xf32>
    %134 = arith.addf %133, %132 : vector<2x80xf32>
    %135 = arith.divf %133, %134 : vector<2x80xf32>
    %136 = vector.extract_strided_slice %135 {offsets = [0, 0], sizes = [2, 20], strides = [1, 1]} : vector<2x80xf32> to vector<2x20xf32>
    %137 = vector.extract_strided_slice %135 {offsets = [0, 20], sizes = [2, 20], strides = [1, 1]} : vector<2x80xf32> to vector<2x20xf32>
    %138 = vector.extract_strided_slice %135 {offsets = [0, 40], sizes = [2, 20], strides = [1, 1]} : vector<2x80xf32> to vector<2x20xf32>
    %cst_42 = arith.constant 2.000000e+00 : f32
    %139 = vector.broadcast %cst_42 : f32 to vector<2x20xf32>
    %140 = arith.mulf %139, %138 : vector<2x20xf32>
    %cst_43 = arith.constant 1.000000e+00 : f32
    %141 = vector.broadcast %cst_43 : f32 to vector<2x20xf32>
    %142 = arith.subf %140, %141 : vector<2x20xf32>
    %143 = vector.extract_strided_slice %135 {offsets = [0, 60], sizes = [2, 20], strides = [1, 1]} : vector<2x80xf32> to vector<2x20xf32>
    %144 = arith.mulf %137, %125 : vector<2x20xf32>
    %145 = arith.mulf %136, %142 : vector<2x20xf32>
    %146 = arith.addf %144, %145 : vector<2x20xf32>
    %147 = math.tanh %146 : vector<2x20xf32>
    %148 = arith.mulf %143, %147 : vector<2x20xf32>
    %c12 = arith.constant 12 : index
    %c0_44 = arith.constant 0 : index
    %149 = vector.load %arg11[%c12, %c0_44] : memref<16x80xf32, #tpu.memory_space<vmem>>, vector<2x80xf32>
    %cst_45 = arith.constant dense<0.000000e+00> : vector<2x80xf32>
    %150 = tpu.matmul %148, %20, %cst_45 {dimension_numbers = #tpu.dot_dimension_numbers<[1], [0], [0], [1], [0, 0, 1, 1], [], []>} : vector<2x20xf32>, vector<20x80xf32>, vector<2x80xf32> -> vector<2x80xf32>
    %151 = arith.addf %149, %150 : vector<2x80xf32>
    %152 = arith.negf %151 : vector<2x80xf32>
    %153 = math.exp %152 : vector<2x80xf32>
    %cst_46 = arith.constant 1.000000e+00 : f32
    %154 = vector.broadcast %cst_46 : f32 to vector<2x80xf32>
    %155 = arith.addf %154, %153 : vector<2x80xf32>
    %156 = arith.divf %154, %155 : vector<2x80xf32>
    %157 = vector.extract_strided_slice %156 {offsets = [0, 0], sizes = [2, 20], strides = [1, 1]} : vector<2x80xf32> to vector<2x20xf32>
    %158 = vector.extract_strided_slice %156 {offsets = [0, 20], sizes = [2, 20], strides = [1, 1]} : vector<2x80xf32> to vector<2x20xf32>
    %159 = vector.extract_strided_slice %156 {offsets = [0, 40], sizes = [2, 20], strides = [1, 1]} : vector<2x80xf32> to vector<2x20xf32>
    %cst_47 = arith.constant 2.000000e+00 : f32
    %160 = vector.broadcast %cst_47 : f32 to vector<2x20xf32>
    %161 = arith.mulf %160, %159 : vector<2x20xf32>
    %cst_48 = arith.constant 1.000000e+00 : f32
    %162 = vector.broadcast %cst_48 : f32 to vector<2x20xf32>
    %163 = arith.subf %161, %162 : vector<2x20xf32>
    %164 = vector.extract_strided_slice %156 {offsets = [0, 60], sizes = [2, 20], strides = [1, 1]} : vector<2x80xf32> to vector<2x20xf32>
    %165 = arith.mulf %158, %146 : vector<2x20xf32>
    %166 = arith.mulf %157, %163 : vector<2x20xf32>
    %167 = arith.addf %165, %166 : vector<2x20xf32>
    %168 = math.tanh %167 : vector<2x20xf32>
    %169 = arith.mulf %164, %168 : vector<2x20xf32>
    %c14 = arith.constant 14 : index
    %c0_49 = arith.constant 0 : index
    %170 = vector.load %arg11[%c14, %c0_49] : memref<16x80xf32, #tpu.memory_space<vmem>>, vector<2x80xf32>
    %cst_50 = arith.constant dense<0.000000e+00> : vector<2x80xf32>
    %171 = tpu.matmul %169, %20, %cst_50 {dimension_numbers = #tpu.dot_dimension_numbers<[1], [0], [0], [1], [0, 0, 1, 1], [], []>} : vector<2x20xf32>, vector<20x80xf32>, vector<2x80xf32> -> vector<2x80xf32>
    %172 = arith.addf %170, %171 : vector<2x80xf32>
    %173 = arith.negf %172 : vector<2x80xf32>
    %174 = math.exp %173 : vector<2x80xf32>
    %cst_51 = arith.constant 1.000000e+00 : f32
    %175 = vector.broadcast %cst_51 : f32 to vector<2x80xf32>
    %176 = arith.addf %175, %174 : vector<2x80xf32>
    %177 = arith.divf %175, %176 : vector<2x80xf32>
    %178 = vector.extract_strided_slice %177 {offsets = [0, 0], sizes = [2, 20], strides = [1, 1]} : vector<2x80xf32> to vector<2x20xf32>
    %179 = vector.extract_strided_slice %177 {offsets = [0, 20], sizes = [2, 20], strides = [1, 1]} : vector<2x80xf32> to vector<2x20xf32>
    %180 = vector.extract_strided_slice %177 {offsets = [0, 40], sizes = [2, 20], strides = [1, 1]} : vector<2x80xf32> to vector<2x20xf32>
    %cst_52 = arith.constant 2.000000e+00 : f32
    %181 = vector.broadcast %cst_52 : f32 to vector<2x20xf32>
    %182 = arith.mulf %181, %180 : vector<2x20xf32>
    %cst_53 = arith.constant 1.000000e+00 : f32
    %183 = vector.broadcast %cst_53 : f32 to vector<2x20xf32>
    %184 = arith.subf %182, %183 : vector<2x20xf32>
    %185 = vector.extract_strided_slice %177 {offsets = [0, 60], sizes = [2, 20], strides = [1, 1]} : vector<2x80xf32> to vector<2x20xf32>
    %186 = arith.mulf %179, %167 : vector<2x20xf32>
    %187 = arith.mulf %178, %184 : vector<2x20xf32>
    %188 = arith.addf %186, %187 : vector<2x20xf32>
    %189 = math.tanh %188 : vector<2x20xf32>
    %190 = arith.mulf %185, %189 : vector<2x20xf32>
    %cst_54 = arith.constant 0.000000e+00 : f32
    %191 = vector.broadcast %cst_54 : f32 to vector<2x20xf32>
    %192 = arith.maximumf %190, %191 : vector<2x20xf32>
    %c0_55 = arith.constant 0 : index
    %c0_56 = arith.constant 0 : index
    %193 = vector.load %arg4[%c0_55, %c0_56] : memref<20x64xf32, #tpu.memory_space<vmem>>, vector<20x64xf32>
    %cst_57 = arith.constant dense<0.000000e+00> : vector<2x64xf32>
    %194 = tpu.matmul %192, %193, %cst_57 {dimension_numbers = #tpu.dot_dimension_numbers<[1], [0], [0], [1], [0, 0, 1, 1], [], []>} : vector<2x20xf32>, vector<20x64xf32>, vector<2x64xf32> -> vector<2x64xf32>
    %c0_58 = arith.constant 0 : index
    %c0_59 = arith.constant 0 : index
    %195 = vector.load %arg5[%c0_58, %c0_59] : memref<1x64xf32, #tpu.memory_space<vmem>>, vector<1x64xf32>
    %196 = vector.broadcast %195 : vector<1x64xf32> to vector<2x64xf32>
    %197 = arith.addf %194, %196 : vector<2x64xf32>
    %cst_60 = arith.constant 0.000000e+00 : f32
    %198 = vector.broadcast %cst_60 : f32 to vector<2x64xf32>
    %199 = arith.maximumf %197, %198 : vector<2x64xf32>
    %c0_61 = arith.constant 0 : index
    %c0_62 = arith.constant 0 : index
    %200 = vector.load %arg6[%c0_61, %c0_62] : memref<64x32xf32, #tpu.memory_space<vmem>>, vector<64x32xf32>
    %cst_63 = arith.constant dense<0.000000e+00> : vector<2x32xf32>
    %201 = tpu.matmul %199, %200, %cst_63 {dimension_numbers = #tpu.dot_dimension_numbers<[1], [0], [0], [1], [0, 0, 1, 1], [], []>} : vector<2x64xf32>, vector<64x32xf32>, vector<2x32xf32> -> vector<2x32xf32>
    %c0_64 = arith.constant 0 : index
    %c0_65 = arith.constant 0 : index
    %202 = vector.load %arg7[%c0_64, %c0_65] : memref<1x32xf32, #tpu.memory_space<vmem>>, vector<1x32xf32>
    %203 = vector.broadcast %202 : vector<1x32xf32> to vector<2x32xf32>
    %204 = arith.addf %201, %203 : vector<2x32xf32>
    %cst_66 = arith.constant 0.000000e+00 : f32
    %205 = vector.broadcast %cst_66 : f32 to vector<2x32xf32>
    %206 = arith.maximumf %204, %205 : vector<2x32xf32>
    %c0_67 = arith.constant 0 : index
    %c0_68 = arith.constant 0 : index
    %207 = vector.load %arg8[%c0_67, %c0_68] : memref<32x5xf32, #tpu.memory_space<vmem>>, vector<32x5xf32>
    %cst_69 = arith.constant dense<0.000000e+00> : vector<2x5xf32>
    %208 = tpu.matmul %206, %207, %cst_69 {dimension_numbers = #tpu.dot_dimension_numbers<[1], [0], [0], [1], [0, 0, 1, 1], [], []>} : vector<2x32xf32>, vector<32x5xf32>, vector<2x5xf32> -> vector<2x5xf32>
    %c0_70 = arith.constant 0 : index
    %c0_71 = arith.constant 0 : index
    %209 = vector.load %arg9[%c0_70, %c0_71] : memref<1x5xf32, #tpu.memory_space<vmem>>, vector<1x5xf32>
    %210 = vector.broadcast %209 : vector<1x5xf32> to vector<2x5xf32>
    %211 = arith.addf %208, %210 : vector<2x5xf32>
    %c0_72 = arith.constant 0 : index
    %c0_73 = arith.constant 0 : index
    %212 = vector.load %arg10[%c0_72, %c0_73] : memref<2x5xf32, #tpu.memory_space<vmem>>, vector<2x5xf32>
    tpu.vector_store %arg10[%c0_72, %c0_73], %211 {strides = array<i32>} : memref<2x5xf32, #tpu.memory_space<vmem>>, vector<2x5xf32>,
    return
  }
}

</mosaic_0001>

<llo_original>
// kernel: tpu_custom_call.1
$region0: #{tpu_custom_call.1}
  #allocation0 [shape = 'u32[]', space=smem, size = 0x4, offset = 0x4, fixed_abs, tag = 'smem constant byte address 0x4 - core index']
  #allocation1 [shape = 'u32[144,128]{1,0:T(1,128)}', space=vmem, size = 0x12000, scoped, tag = 'internal scratch']
  #allocation2 [shape = 'f32[16,80]{1,0:T(8,128)}', space=vmem, size = 0x2000, scoped, tag = 'scratch operand']
  %s0 = inlined_call_operand.vmem [shape: f32[16,10], index: 0, kind: input, shape index: {}]
  %s1 = inlined_call_operand.vmem [shape: f32[10,80], index: 1, kind: input, shape index: {}]
  %s2 = inlined_call_operand.vmem [shape: f32[20,80], index: 2, kind: input, shape index: {}]
  %s3 = inlined_call_operand.vmem [shape: f32[1,80], index: 3, kind: input, shape index: {}]
  %s4 = inlined_call_operand.vmem [shape: f32[20,64], index: 4, kind: input, shape index: {}]
  %s5 = inlined_call_operand.vmem [shape: f32[1,64], index: 5, kind: input, shape index: {}]
  %s6 = inlined_call_operand.vmem [shape: f32[64,32], index: 6, kind: input, shape index: {}]
  %s7 = inlined_call_operand.vmem [shape: f32[1,32], index: 7, kind: input, shape index: {}]
  %s8 = inlined_call_operand.vmem [shape: f32[32,5], index: 8, kind: input, shape index: {}]
  %s9 = inlined_call_operand.vmem [shape: f32[1,5], index: 9, kind: input, shape index: {}]
  %s10 = inlined_call_operand.hbm [shape: f32[2,5], index: 10, kind: output, shape index: {}]
  %s11 = sld [smem:[#allocation0]]
  $region50: #{tpu_custom_call.1} parent=0
    _
  %s13 = ssub.s32 1, %s11
  %s14 = scalar_select 0, %s13, %s11
  $region1: #{tpu_custom_call.1} parent=0
    #allocation3 [shape = 'u8[1024]{0}', space=vmem, size = 0x400, scoped, tag = 'output window, operand 0, single buffered']
    #allocation4 [shape = 's32[1]{0}', space=sflag, size = 0x4, scoped, tag = 'scoped memory for tpu_custom_call.1']
    %15 = vsyncpa [#allocation4], 0
    // Predicated region
    $region2: #{tpu_custom_call.1} parent=1 // pred_check
      _
    $region3: #{tpu_custom_call.1} parent=1 // pred_check_branch
      %17 = sbr.rel (0) target = $region5
    $region4: #{tpu_custom_call.1} parent=1 // pred_region
      _
    $region5: #{tpu_custom_call.1} parent=1 // pred_fallthru
      _
    // Predicated region
    $region6: #{tpu_custom_call.1} parent=1 // pred_check
      _
    $region7: #{tpu_custom_call.1} parent=1 // pred_check_branch
      %19 = sbr.rel (0) target = $region9
    $region8: #{tpu_custom_call.1} parent=1 // pred_region
      _
    $region9: #{tpu_custom_call.1} parent=1 // pred_fallthru
      _
    // Predicated region
    $region10: #{tpu_custom_call.1} parent=1 // pred_check
      _
    $region11: #{tpu_custom_call.1} parent=1 // pred_check_branch
      %21 = sbr.rel (0) target = $region13
    $region12: #{tpu_custom_call.1} parent=1 // pred_region
      _
    $region13: #{tpu_custom_call.1} parent=1 // pred_fallthru
      _
    // Predicated region
    $region14: #{tpu_custom_call.1} parent=1 // pred_check
      _
    $region15: #{tpu_custom_call.1} parent=1 // pred_check_branch
      %23 = sbr.rel (0) target = $region17
    $region16: #{tpu_custom_call.1} parent=1 // pred_region
      _
    $region17: #{tpu_custom_call.1} parent=1 // pred_fallthru
      _
    // Predicated region
    $region18: #{tpu_custom_call.1} parent=1 // pred_check
      _
    $region19: #{tpu_custom_call.1} parent=1 // pred_check_branch
      %25 = sbr.rel (0) target = $region21
    $region20: #{tpu_custom_call.1} parent=1 // pred_region
      _
    $region21: #{tpu_custom_call.1} parent=1 // pred_fallthru
      _
    // Predicated region
    $region22: #{tpu_custom_call.1} parent=1 // pred_check
      _
    $region23: #{tpu_custom_call.1} parent=1 // pred_check_branch
      %27 = sbr.rel (0) target = $region25
    $region24: #{tpu_custom_call.1} parent=1 // pred_region
      _
    $region25: #{tpu_custom_call.1} parent=1 // pred_fallthru
      _
    // Predicated region
    $region26: #{tpu_custom_call.1} parent=1 // pred_check
      _
    $region27: #{tpu_custom_call.1} parent=1 // pred_check_branch
      %29 = sbr.rel (0) target = $region29
    $region28: #{tpu_custom_call.1} parent=1 // pred_region
      _
    $region29: #{tpu_custom_call.1} parent=1 // pred_fallthru
      _
    // Predicated region
    $region30: #{tpu_custom_call.1} parent=1 // pred_check
      _
    $region31: #{tpu_custom_call.1} parent=1 // pred_check_branch
      %31 = sbr.rel (0) target = $region33
    $region32: #{tpu_custom_call.1} parent=1 // pred_region
      _
    $region33: #{tpu_custom_call.1} parent=1 // pred_fallthru
      _
    // Predicated region
    $region34: #{tpu_custom_call.1} parent=1 // pred_check
      _
    $region35: #{tpu_custom_call.1} parent=1 // pred_check_branch
      %33 = sbr.rel (0) target = $region37
    $region36: #{tpu_custom_call.1} parent=1 // pred_region
      _
    $region37: #{tpu_custom_call.1} parent=1 // pred_fallthru
      _
    // Predicated region
    $region38: #{tpu_custom_call.1} parent=1 // pred_check
      _
    $region39: #{tpu_custom_call.1} parent=1 // pred_check_branch
      %35 = sbr.rel (0) target = $region41
    $region40: #{tpu_custom_call.1} parent=1 // pred_region
      _
    $region41: #{tpu_custom_call.1} parent=1 // pred_fallthru
      _
    %v36 = vlaneseq
    %v37 = vand.u32 %v36, 127
    %vm38 = vcmp.ge.s32.totalorder %v37, 40
    %vm39 = vcmp.lt.s32.totalorder %v37, 60
    %vm40 = vmand %vm38, %vm39
    %v41 = vsel %vm40, 2.0, 1.0
    %v42 = vld [vmem:[%s0] sm:$0xff]
    %v43 = vld [vmem:[%s0 + $0x8] sm:$0xff]
    %v44 = vld [vmem:[%s1] sm:$0xff]
    %v45 = vld [vmem:[%s1 + $0x8] sm:$0x3]
    %v46 = vld [vmem:[%s3] sm:$0x1]
    %v48 = vlaneseq
    %v49 = vshrl.u32 %v48, 7
    %v50 = vsub.s32 0, %v49
    %v51 = vrot.slane %v46, %v50
    %vm53 = vcmask 80896
    %v55 = vsel %vm53, %v42, 0
    %v58 = vsel %vm53, %v43, 0
    %vm60 = vcmask 1041408
    %v62 = vsel %vm60, %v45, 0
    %64 = vmatprep.subr.mxu0 0.0
    %65 = vmatpush1.msra.mxu0 %v44
    %66 = vmatprep.subr.mxu0 0.0
    %67 = vmatpush1.msra.mxu0 %v62
    %68 = vmatprep.subr.mxu0 0.0
    %69 = vmatpush1.msra.mxu0 0.0
    %70 = vmatprep.subr.mxu0 0.0
    %71 = vmatpush1.msra.mxu0 0.0
    %72 = vmatprep.subr.mxu0 0.0
    %73 = vmatpush1.msra.mxu0 0.0
    %74 = vmatprep.subr.mxu0 0.0
    %75 = vmatpush1.msra.mxu0 0.0
    %76 = vmatprep.subr.mxu0 0.0
    %77 = vmatpush1.msra.mxu0 0.0
    %78 = vmatprep.subr.mxu0 0.0
    %79 = vmatpush1.msra.mxu0 0.0
    %80 = vmatprep.subr.mxu0 0.0
    %81 = vmatpush1.msra.mxu0 0.0
    %82 = vmatprep.subr.mxu0 0.0
    %83 = vmatpush1.msra.mxu0 0.0
    %84 = vmatprep.subr.mxu0 0.0
    %85 = vmatpush1.msra.mxu0 0.0
    %86 = vmatprep.subr.mxu0 0.0
    %87 = vmatpush1.msra.mxu0 0.0
    %88 = vmatprep.subr.mxu0 0.0
    %89 = vmatpush1.msra.mxu0 0.0
    %90 = vmatprep.subr.mxu0 0.0
    %91 = vmatpush1.msra.mxu0 0.0
    %92 = vmatprep.subr.mxu0 0.0
    %93 = vmatpush1.msra.mxu0 0.0
    %94 = vmatprep.subr.mxu0 0.0
    %95 = vmatpush1.msra.mxu0 0.0
    %96 = vmatprep.subr.mxu0 0.0
    %97 = vmatpush1.msra.mxu0 0.0
    %98 = vmatprep.subr.mxu0 0.0
    %99 = vmatpush1.msra.mxu0 0.0
    %100 = vmatprep.subr.mxu0 0.0
    %101 = vmatpush1.msra.mxu0 0.0
    %102 = vmatprep.subr.mxu0 0.0
    %103 = vmatpush1.msra.mxu0 0.0
    %104 = vmatprep.subr.mxu0 0.0
    %105 = vmatpush1.msra.mxu0 0.0
    %106 = vmatprep.subr.mxu0 0.0
    %107 = vmatpush1.msra.mxu0 0.0
    %108 = vmatprep.subr.mxu0 0.0
    %109 = vmatpush1.msra.mxu0 0.0
    %110 = vmatprep.subr.mxu0 0.0
    %111 = vmatpush1.msra.mxu0 0.0
    %112 = vmatprep.subr.mxu0 0.0
    %113 = vmatpush1.msra.mxu0 0.0
    %114 = vmatprep.subr.mxu0 0.0
    %115 = vmatpush1.msra.mxu0 0.0
    %116 = vmatprep.subr.mxu0 0.0
    %117 = vmatpush1.msra.mxu0 0.0
    %118 = vmatprep.subr.mxu0 0.0
    %119 = vmatpush1.msra.mxu0 0.0
    %120 = vmatprep.subr.mxu0 0.0
    %121 = vmatpush1.msra.mxu0 0.0
    %122 = vmatprep.subr.mxu0 0.0
    %123 = vmatpush1.msra.mxu0 0.0
    %124 = vmatprep.subr.mxu0 0.0
    %125 = vmatpush1.msra.mxu0 0.0
    %126 = vmatprep.subr.mxu0 0.0
    %127 = vmatpush1.msra.mxu0 0.0
    %128 = vmatprep.mubr.f32.mxu0 0.0
    %129 = vmatmul.mubr.f32.gmra.mrb[0].mxu0 %v55
    %v130 = vpop.f32.mrb[0].mxu0
    %v131 = vadd.f32 %v51, %v130
    %v132 = vpop.f32.mrb[0].mxu0
    %133 = vmatprep.mubr.f32.mxu0 0.0
    %134 = vmatmul.mubr.f32.gmra.mrb[0].mxu0 %v58
    %v135 = vpop.f32.mrb[0].mxu0
    %v136 = vadd.f32 %v51, %v135
    %v137 = vpop.f32.mrb[0].mxu0
    %138 = vdwg.mxu0
    %v139 = vmul.f32 %v131, %v41
    %v140 = vmul.f32 %v136, %v41
    %vm141 = vcmask 654336
    %142 = vst.msk [vmem:[#allocation2] sm:$0xff] %vm141, %v139
    %143 = vst.msk [vmem:[#allocation2 + $0x8] sm:$0xff] %vm141, %v140
    %v144 = vld [vmem:[%s2] sm:$0xff]
    %v145 = vld [vmem:[%s2 + $0x8] sm:$0xff]
    %v146 = vld [vmem:[%s2 + $0x10] sm:$0xf]
    %v147 = vmul.f32 %v144, %v41
    %v148 = vmul.f32 %v145, %v41
    %v149 = vmul.f32 %v146, %v41
    %v150 = vld [vmem:[#allocation2] sm:$0x3]
    %vm151 = vcmask 162816
    %v153 = vsel %vm151, 0.0, 0
    %vm155 = vcmask 1043456
    %v157 = vsel %vm155, %v149, 0
    %159 = vmatprep.subr.mxu0 0.0
    %160 = vmatpush1.msra.mxu0 %v147
    %161 = vmatprep.subr.mxu0 0.0
    %162 = vmatpush1.msra.mxu0 %v148
    %163 = vmatprep.subr.mxu0 0.0
    %164 = vmatpush1.msra.mxu0 %v157
    %165 = vmatprep.subr.mxu0 0.0
    %166 = vmatpush1.msra.mxu0 0.0
    %167 = vmatprep.subr.mxu0 0.0
    %168 = vmatpush1.msra.mxu0 0.0
    %169 = vmatprep.subr.mxu0 0.0
    %170 = vmatpush1.msra.mxu0 0.0
    %171 = vmatprep.subr.mxu0 0.0
    %172 = vmatpush1.msra.mxu0 0.0
    %173 = vmatprep.subr.mxu0 0.0
    %174 = vmatpush1.msra.mxu0 0.0
    %175 = vmatprep.subr.mxu0 0.0
    %176 = vmatpush1.msra.mxu0 0.0
    %177 = vmatprep.subr.mxu0 0.0
    %178 = vmatpush1.msra.mxu0 0.0
    %179 = vmatprep.subr.mxu0 0.0
    %180 = vmatpush1.msra.mxu0 0.0
    %181 = vmatprep.subr.mxu0 0.0
    %182 = vmatpush1.msra.mxu0 0.0
    %183 = vmatprep.subr.mxu0 0.0
    %184 = vmatpush1.msra.mxu0 0.0
    %185 = vmatprep.subr.mxu0 0.0
    %186 = vmatpush1.msra.mxu0 0.0
    %187 = vmatprep.subr.mxu0 0.0
    %188 = vmatpush1.msra.mxu0 0.0
    %189 = vmatprep.subr.mxu0 0.0
    %190 = vmatpush1.msra.mxu0 0.0
    %191 = vmatprep.subr.mxu0 0.0
    %192 = vmatpush1.msra.mxu0 0.0
    %193 = vmatprep.subr.mxu0 0.0
    %194 = vmatpush1.msra.mxu0 0.0
    %195 = vmatprep.subr.mxu0 0.0
    %196 = vmatpush1.msra.mxu0 0.0
    %197 = vmatprep.subr.mxu0 0.0
    %198 = vmatpush1.msra.mxu0 0.0
    %199 = vmatprep.subr.mxu0 0.0
    %200 = vmatpush1.msra.mxu0 0.0
    %201 = vmatprep.subr.mxu0 0.0
    %202 = vmatpush1.msra.mxu0 0.0
    %203 = vmatprep.subr.mxu0 0.0
    %204 = vmatpush1.msra.mxu0 0.0
    %205 = vmatprep.subr.mxu0 0.0
    %206 = vmatpush1.msra.mxu0 0.0
    %207 = vmatprep.subr.mxu0 0.0
    %208 = vmatpush1.msra.mxu0 0.0
    %209 = vmatprep.subr.mxu0 0.0
    %210 = vmatpush1.msra.mxu0 0.0
    %211 = vmatprep.subr.mxu0 0.0
    %212 = vmatpush1.msra.mxu0 0.0
    %213 = vmatprep.subr.mxu0 0.0
    %214 = vmatpush1.msra.mxu0 0.0
    %215 = vmatprep.subr.mxu0 0.0
    %216 = vmatpush1.msra.mxu0 0.0
    %217 = vmatprep.subr.mxu0 0.0
    %218 = vmatpush1.msra.mxu0 0.0
    %219 = vmatprep.subr.mxu0 0.0
    %220 = vmatpush1.msra.mxu0 0.0
    %221 = vmatprep.subr.mxu0 0.0
    %222 = vmatpush1.msra.mxu0 0.0
    %223 = vmatprep.mubr.f32.mxu0 0.0
    %224 = vmatmul.mubr.f32.gmra.mrb[0].mxu0 %v153
    %v225 = vpop.f32.mrb[0].mxu0
    %v226 = vadd.f32 0.0, %v225
    %v227 = vpop.f32.mrb[0].mxu0
    %228 = vdwg.mxu0
    %v229 = vadd.f32 %v150, %v226
    %v230 = vxor.u32 %v229, 2147483648
    %v231 = vmul.f32 %v230, 1.442695
    %v232 = vpow.pop %v231
    %v233 = vadd.f32 %v232, 1.0
    %v234 = vrcp.pop %v233
    %v235 = vmul.f32 1.0, %v234
    %v236 = vmul.f32 %v235, 2.0
    %v237 = vsub.f32 %v236, 1.0
    %v238 = vmul.f32 %v235, 0.0
    %240 = vrot.lane.b32.xlu0 %v237, 88
    %v241 = vpop.permute.xlu0 %240
    %v243 = vmul.f32 %v235, %v241
    %245 = vrot.lane.b32.xlu0 %v243, 20
    %v246 = vpop.permute.xlu0 %245
    %v248 = vadd.f32 %v238, %v246
    %v249 = vtanh.pop %v248
    %251 = vrot.lane.b32.xlu0 %v249, 40
    %v252 = vpop.permute.xlu0 %251
    %v254 = vmul.f32 %v235, %v252
    %v255 = vld [vmem:[#allocation2 + $0x2] sm:$0x3]
    %257 = vrot.lane.b32.xlu0 %v254, 68
    %v258 = vpop.permute.xlu0 %257
    %v259 = vsel %vm151, %v258, 0
    %261 = vmatprep.subr.mxu0 0.0
    %262 = vmatpush1.msra.mxu0 %v147
    %263 = vmatprep.subr.mxu0 0.0
    %264 = vmatpush1.msra.mxu0 %v148
    %265 = vmatprep.subr.mxu0 0.0
    %266 = vmatpush1.msra.mxu0 %v157
    %267 = vmatprep.subr.mxu0 0.0
    %268 = vmatpush1.msra.mxu0 0.0
    %269 = vmatprep.subr.mxu0 0.0
    %270 = vmatpush1.msra.mxu0 0.0
    %271 = vmatprep.subr.mxu0 0.0
    %272 = vmatpush1.msra.mxu0 0.0
    %273 = vmatprep.subr.mxu0 0.0
    %274 = vmatpush1.msra.mxu0 0.0
    %275 = vmatprep.subr.mxu0 0.0
    %276 = vmatpush1.msra.mxu0 0.0
    %277 = vmatprep.subr.mxu0 0.0
    %278 = vmatpush1.msra.mxu0 0.0
    %279 = vmatprep.subr.mxu0 0.0
    %280 = vmatpush1.msra.mxu0 0.0
    %281 = vmatprep.subr.mxu0 0.0
    %282 = vmatpush1.msra.mxu0 0.0
    %283 = vmatprep.subr.mxu0 0.0
    %284 = vmatpush1.msra.mxu0 0.0
    %285 = vmatprep.subr.mxu0 0.0
    %286 = vmatpush1.msra.mxu0 0.0
    %287 = vmatprep.subr.mxu0 0.0
    %288 = vmatpush1.msra.mxu0 0.0
    %289 = vmatprep.subr.mxu0 0.0
    %290 = vmatpush1.msra.mxu0 0.0
    %291 = vmatprep.subr.mxu0 0.0
    %292 = vmatpush1.msra.mxu0 0.0
    %293 = vmatprep.subr.mxu0 0.0
    %294 = vmatpush1.msra.mxu0 0.0
    %295 = vmatprep.subr.mxu0 0.0
    %296 = vmatpush1.msra.mxu0 0.0
    %297 = vmatprep.subr.mxu0 0.0
    %298 = vmatpush1.msra.mxu0 0.0
    %299 = vmatprep.subr.mxu0 0.0
    %300 = vmatpush1.msra.mxu0 0.0
    %301 = vmatprep.subr.mxu0 0.0
    %302 = vmatpush1.msra.mxu0 0.0
    %303 = vmatprep.subr.mxu0 0.0
    %304 = vmatpush1.msra.mxu0 0.0
    %305 = vmatprep.subr.mxu0 0.0
    %306 = vmatpush1.msra.mxu0 0.0
    %307 = vmatprep.subr.mxu0 0.0
    %308 = vmatpush1.msra.mxu0 0.0
    %309 = vmatprep.subr.mxu0 0.0
    %310 = vmatpush1.msra.mxu0 0.0
    %311 = vmatprep.subr.mxu0 0.0
    %312 = vmatpush1.msra.mxu0 0.0
    %313 = vmatprep.subr.mxu0 0.0
    %314 = vmatpush1.msra.mxu0 0.0
    %315 = vmatprep.subr.mxu0 0.0
    %316 = vmatpush1.msra.mxu0 0.0
    %317 = vmatprep.subr.mxu0 0.0
    %318 = vmatpush1.msra.mxu0 0.0
    %319 = vmatprep.subr.mxu0 0.0
    %320 = vmatpush1.msra.mxu0 0.0
    %321 = vmatprep.subr.mxu0 0.0
    %322 = vmatpush1.msra.mxu0 0.0
    %323 = vmatprep.subr.mxu0 0.0
    %324 = vmatpush1.msra.mxu0 0.0
    %325 = vmatprep.mubr.f32.mxu0 0.0
    %326 = vmatmul.mubr.f32.gmra.mrb[0].mxu0 %v259
    %v327 = vpop.f32.mrb[0].mxu0
    %v328 = vadd.f32 0.0, %v327
    %v329 = vpop.f32.mrb[0].mxu0
    %330 = vdwg.mxu0
    %v331 = vadd.f32 %v255, %v328
    %v332 = vxor.u32 %v331, 2147483648
    %v333 = vmul.f32 %v332, 1.442695
    %v334 = vpow.pop %v333
    %v335 = vadd.f32 %v334, 1.0
    %v336 = vrcp.pop %v335
    %v337 = vmul.f32 1.0, %v336
    %v338 = vmul.f32 %v337, 2.0
    %v339 = vsub.f32 %v338, 1.0
    %v340 = vmul.f32 %v337, %v248
    %342 = vrot.lane.b32.xlu0 %v339, 88
    %v343 = vpop.permute.xlu0 %342
    %v345 = vmul.f32 %v337, %v343
    %347 = vrot.lane.b32.xlu0 %v345, 20
    %v348 = vpop.permute.xlu0 %347
    %v350 = vadd.f32 %v340, %v348
    %v351 = vtanh.pop %v350
    %353 = vrot.lane.b32.xlu0 %v351, 40
    %v354 = vpop.permute.xlu0 %353
    %v356 = vmul.f32 %v337, %v354
    %v357 = vld [vmem:[#allocation2 + $0x4] sm:$0x3]
    %359 = vrot.lane.b32.xlu0 %v356, 68
    %v360 = vpop.permute.xlu0 %359
    %v361 = vsel %vm151, %v360, 0
    %363 = vmatprep.subr.mxu0 0.0
    %364 = vmatpush1.msra.mxu0 %v147
    %365 = vmatprep.subr.mxu0 0.0
    %366 = vmatpush1.msra.mxu0 %v148
    %367 = vmatprep.subr.mxu0 0.0
    %368 = vmatpush1.msra.mxu0 %v157
    %369 = vmatprep.subr.mxu0 0.0
    %370 = vmatpush1.msra.mxu0 0.0
    %371 = vmatprep.subr.mxu0 0.0
    %372 = vmatpush1.msra.mxu0 0.0
    %373 = vmatprep.subr.mxu0 0.0
    %374 = vmatpush1.msra.mxu0 0.0
    %375 = vmatprep.subr.mxu0 0.0
    %376 = vmatpush1.msra.mxu0 0.0
    %377 = vmatprep.subr.mxu0 0.0
    %378 = vmatpush1.msra.mxu0 0.0
    %379 = vmatprep.subr.mxu0 0.0
    %380 = vmatpush1.msra.mxu0 0.0
    %381 = vmatprep.subr.mxu0 0.0
    %382 = vmatpush1.msra.mxu0 0.0
    %383 = vmatprep.subr.mxu0 0.0
    %384 = vmatpush1.msra.mxu0 0.0
    %385 = vmatprep.subr.mxu0 0.0
    %386 = vmatpush1.msra.mxu0 0.0
    %387 = vmatprep.subr.mxu0 0.0
    %388 = vmatpush1.msra.mxu0 0.0
    %389 = vmatprep.subr.mxu0 0.0
    %390 = vmatpush1.msra.mxu0 0.0
    %391 = vmatprep.subr.mxu0 0.0
    %392 = vmatpush1.msra.mxu0 0.0
    %393 = vmatprep.subr.mxu0 0.0
    %394 = vmatpush1.msra.mxu0 0.0
    %395 = vmatprep.subr.mxu0 0.0
    %396 = vmatpush1.msra.mxu0 0.0
    %397 = vmatprep.subr.mxu0 0.0
    %398 = vmatpush1.msra.mxu0 0.0
    %399 = vmatprep.subr.mxu0 0.0
    %400 = vmatpush1.msra.mxu0 0.0
    %401 = vmatprep.subr.mxu0 0.0
    %402 = vmatpush1.msra.mxu0 0.0
    %403 = vmatprep.subr.mxu0 0.0
    %404 = vmatpush1.msra.mxu0 0.0
    %405 = vmatprep.subr.mxu0 0.0
    %406 = vmatpush1.msra.mxu0 0.0
    %407 = vmatprep.subr.mxu0 0.0
    %408 = vmatpush1.msra.mxu0 0.0
    %409 = vmatprep.subr.mxu0 0.0
    %410 = vmatpush1.msra.mxu0 0.0
    %411 = vmatprep.subr.mxu0 0.0
    %412 = vmatpush1.msra.mxu0 0.0
    %413 = vmatprep.subr.mxu0 0.0
    %414 = vmatpush1.msra.mxu0 0.0
    %415 = vmatprep.subr.mxu0 0.0
    %416 = vmatpush1.msra.mxu0 0.0
    %417 = vmatprep.subr.mxu0 0.0
    %418 = vmatpush1.msra.mxu0 0.0
    %419 = vmatprep.subr.mxu0 0.0
    %420 = vmatpush1.msra.mxu0 0.0
    %421 = vmatprep.subr.mxu0 0.0
    %422 = vmatpush1.msra.mxu0 0.0
    %423 = vmatprep.subr.mxu0 0.0
    %424 = vmatpush1.msra.mxu0 0.0
    %425 = vmatprep.subr.mxu0 0.0
    %426 = vmatpush1.msra.mxu0 0.0
    %427 = vmatprep.mubr.f32.mxu0 0.0
    %428 = vmatmul.mubr.f32.gmra.mrb[0].mxu0 %v361
    %v429 = vpop.f32.mrb[0].mxu0
    %v430 = vadd.f32 0.0, %v429
    %v431 = vpop.f32.mrb[0].mxu0
    %432 = vdwg.mxu0
    %v433 = vadd.f32 %v357, %v430
    %v434 = vxor.u32 %v433, 2147483648
    %v435 = vmul.f32 %v434, 1.442695
    %v436 = vpow.pop %v435
    %v437 = vadd.f32 %v436, 1.0
    %v438 = vrcp.pop %v437
    %v439 = vmul.f32 1.0, %v438
    %v440 = vmul.f32 %v439, 2.0
    %v441 = vsub.f32 %v440, 1.0
    %v442 = vmul.f32 %v439, %v350
    %444 = vrot.lane.b32.xlu0 %v441, 88
    %v445 = vpop.permute.xlu0 %444
    %v447 = vmul.f32 %v439, %v445
    %449 = vrot.lane.b32.xlu0 %v447, 20
    %v450 = vpop.permute.xlu0 %449
    %v452 = vadd.f32 %v442, %v450
    %v453 = vtanh.pop %v452
    %455 = vrot.lane.b32.xlu0 %v453, 40
    %v456 = vpop.permute.xlu0 %455
    %v458 = vmul.f32 %v439, %v456
    %v459 = vld [vmem:[#allocation2 + $0x6] sm:$0x3]
    %461 = vrot.lane.b32.xlu0 %v458, 68
    %v462 = vpop.permute.xlu0 %461
    %v463 = vsel %vm151, %v462, 0
    %465 = vmatprep.subr.mxu0 0.0
    %466 = vmatpush1.msra.mxu0 %v147
    %467 = vmatprep.subr.mxu0 0.0
    %468 = vmatpush1.msra.mxu0 %v148
    %469 = vmatprep.subr.mxu0 0.0
    %470 = vmatpush1.msra.mxu0 %v157
    %471 = vmatprep.subr.mxu0 0.0
    %472 = vmatpush1.msra.mxu0 0.0
    %473 = vmatprep.subr.mxu0 0.0
    %474 = vmatpush1.msra.mxu0 0.0
    %475 = vmatprep.subr.mxu0 0.0
    %476 = vmatpush1.msra.mxu0 0.0
    %477 = vmatprep.subr.mxu0 0.0
    %478 = vmatpush1.msra.mxu0 0.0
    %479 = vmatprep.subr.mxu0 0.0
    %480 = vmatpush1.msra.mxu0 0.0
    %481 = vmatprep.subr.mxu0 0.0
    %482 = vmatpush1.msra.mxu0 0.0
    %483 = vmatprep.subr.mxu0 0.0
    %484 = vmatpush1.msra.mxu0 0.0
    %485 = vmatprep.subr.mxu0 0.0
    %486 = vmatpush1.msra.mxu0 0.0
    %487 = vmatprep.subr.mxu0 0.0
    %488 = vmatpush1.msra.mxu0 0.0
    %489 = vmatprep.subr.mxu0 0.0
    %490 = vmatpush1.msra.mxu0 0.0
    %491 = vmatprep.subr.mxu0 0.0
    %492 = vmatpush1.msra.mxu0 0.0
    %493 = vmatprep.subr.mxu0 0.0
    %494 = vmatpush1.msra.mxu0 0.0
    %495 = vmatprep.subr.mxu0 0.0
    %496 = vmatpush1.msra.mxu0 0.0
    %497 = vmatprep.subr.mxu0 0.0
    %498 = vmatpush1.msra.mxu0 0.0
    %499 = vmatprep.subr.mxu0 0.0
    %500 = vmatpush1.msra.mxu0 0.0
    %501 = vmatprep.subr.mxu0 0.0
    %502 = vmatpush1.msra.mxu0 0.0
    %503 = vmatprep.subr.mxu0 0.0
    %504 = vmatpush1.msra.mxu0 0.0
    %505 = vmatprep.subr.mxu0 0.0
    %506 = vmatpush1.msra.mxu0 0.0
    %507 = vmatprep.subr.mxu0 0.0
    %508 = vmatpush1.msra.mxu0 0.0
    %509 = vmatprep.subr.mxu0 0.0
    %510 = vmatpush1.msra.mxu0 0.0
    %511 = vmatprep.subr.mxu0 0.0
    %512 = vmatpush1.msra.mxu0 0.0
    %513 = vmatprep.subr.mxu0 0.0
    %514 = vmatpush1.msra.mxu0 0.0
    %515 = vmatprep.subr.mxu0 0.0
    %516 = vmatpush1.msra.mxu0 0.0
    %517 = vmatprep.subr.mxu0 0.0
    %518 = vmatpush1.msra.mxu0 0.0
    %519 = vmatprep.subr.mxu0 0.0
    %520 = vmatpush1.msra.mxu0 0.0
    %521 = vmatprep.subr.mxu0 0.0
    %522 = vmatpush1.msra.mxu0 0.0
    %523 = vmatprep.subr.mxu0 0.0
    %524 = vmatpush1.msra.mxu0 0.0
    %525 = vmatprep.subr.mxu0 0.0
    %526 = vmatpush1.msra.mxu0 0.0
    %527 = vmatprep.subr.mxu0 0.0
    %528 = vmatpush1.msra.mxu0 0.0
    %529 = vmatprep.mubr.f32.mxu0 0.0
    %530 = vmatmul.mubr.f32.gmra.mrb[0].mxu0 %v463
    %v531 = vpop.f32.mrb[0].mxu0
    %v532 = vadd.f32 0.0, %v531
    %v533 = vpop.f32.mrb[0].mxu0
    %534 = vdwg.mxu0
    %v535 = vadd.f32 %v459, %v532
    %v536 = vxor.u32 %v535, 2147483648
    %v537 = vmul.f32 %v536, 1.442695
    %v538 = vpow.pop %v537
    %v539 = vadd.f32 %v538, 1.0
    %v540 = vrcp.pop %v539
    %v541 = vmul.f32 1.0, %v540
    %v542 = vmul.f32 %v541, 2.0
    %v543 = vsub.f32 %v542, 1.0
    %v544 = vmul.f32 %v541, %v452
    %546 = vrot.lane.b32.xlu0 %v543, 88
    %v547 = vpop.permute.xlu0 %546
    %v549 = vmul.f32 %v541, %v547
    %551 = vrot.lane.b32.xlu0 %v549, 20
    %v552 = vpop.permute.xlu0 %551
    %v554 = vadd.f32 %v544, %v552
    %v555 = vtanh.pop %v554
    %557 = vrot.lane.b32.xlu0 %v555, 40
    %v558 = vpop.permute.xlu0 %557
    %v560 = vmul.f32 %v541, %v558
    %v561 = vld [vmem:[#allocation2 + $0x8] sm:$0x3]
    %563 = vrot.lane.b32.xlu0 %v560, 68
    %v564 = vpop.permute.xlu0 %563
    %v565 = vsel %vm151, %v564, 0
    %567 = vmatprep.subr.mxu0 0.0
    %568 = vmatpush1.msra.mxu0 %v147
    %569 = vmatprep.subr.mxu0 0.0
    %570 = vmatpush1.msra.mxu0 %v148
    %571 = vmatprep.subr.mxu0 0.0
    %572 = vmatpush1.msra.mxu0 %v157
    %573 = vmatprep.subr.mxu0 0.0
    %574 = vmatpush1.msra.mxu0 0.0
    %575 = vmatprep.subr.mxu0 0.0
    %576 = vmatpush1.msra.mxu0 0.0
    %577 = vmatprep.subr.mxu0 0.0
    %578 = vmatpush1.msra.mxu0 0.0
    %579 = vmatprep.subr.mxu0 0.0
    %580 = vmatpush1.msra.mxu0 0.0
    %581 = vmatprep.subr.mxu0 0.0
    %582 = vmatpush1.msra.mxu0 0.0
    %583 = vmatprep.subr.mxu0 0.0
    %584 = vmatpush1.msra.mxu0 0.0
    %585 = vmatprep.subr.mxu0 0.0
    %586 = vmatpush1.msra.mxu0 0.0
    %587 = vmatprep.subr.mxu0 0.0
    %588 = vmatpush1.msra.mxu0 0.0
    %589 = vmatprep.subr.mxu0 0.0
    %590 = vmatpush1.msra.mxu0 0.0
    %591 = vmatprep.subr.mxu0 0.0
    %592 = vmatpush1.msra.mxu0 0.0
    %593 = vmatprep.subr.mxu0 0.0
    %594 = vmatpush1.msra.mxu0 0.0
    %595 = vmatprep.subr.mxu0 0.0
    %596 = vmatpush1.msra.mxu0 0.0
    %597 = vmatprep.subr.mxu0 0.0
    %598 = vmatpush1.msra.mxu0 0.0
    %599 = vmatprep.subr.mxu0 0.0
    %600 = vmatpush1.msra.mxu0 0.0
    %601 = vmatprep.subr.mxu0 0.0
    %602 = vmatpush1.msra.mxu0 0.0
    %603 = vmatprep.subr.mxu0 0.0
    %604 = vmatpush1.msra.mxu0 0.0
    %605 = vmatprep.subr.mxu0 0.0
    %606 = vmatpush1.msra.mxu0 0.0
    %607 = vmatprep.subr.mxu0 0.0
    %608 = vmatpush1.msra.mxu0 0.0
    %609 = vmatprep.subr.mxu0 0.0
    %610 = vmatpush1.msra.mxu0 0.0
    %611 = vmatprep.subr.mxu0 0.0
    %612 = vmatpush1.msra.mxu0 0.0
    %613 = vmatprep.subr.mxu0 0.0
    %614 = vmatpush1.msra.mxu0 0.0
    %615 = vmatprep.subr.mxu0 0.0
    %616 = vmatpush1.msra.mxu0 0.0
    %617 = vmatprep.subr.mxu0 0.0
    %618 = vmatpush1.msra.mxu0 0.0
    %619 = vmatprep.subr.mxu0 0.0
    %620 = vmatpush1.msra.mxu0 0.0
    %621 = vmatprep.subr.mxu0 0.0
    %622 = vmatpush1.msra.mxu0 0.0
    %623 = vmatprep.subr.mxu0 0.0
    %624 = vmatpush1.msra.mxu0 0.0
    %625 = vmatprep.subr.mxu0 0.0
    %626 = vmatpush1.msra.mxu0 0.0
    %627 = vmatprep.subr.mxu0 0.0
    %628 = vmatpush1.msra.mxu0 0.0
    %629 = vmatprep.subr.mxu0 0.0
    %630 = vmatpush1.msra.mxu0 0.0
    %631 = vmatprep.mubr.f32.mxu0 0.0
    %632 = vmatmul.mubr.f32.gmra.mrb[0].mxu0 %v565
    %v633 = vpop.f32.mrb[0].mxu0
    %v634 = vadd.f32 0.0, %v633
    %v635 = vpop.f32.mrb[0].mxu0
    %636 = vdwg.mxu0
    %v637 = vadd.f32 %v561, %v634
    %v638 = vxor.u32 %v637, 2147483648
    %v639 = vmul.f32 %v638, 1.442695
    %v640 = vpow.pop %v639
    %v641 = vadd.f32 %v640, 1.0
    %v642 = vrcp.pop %v641
    %v643 = vmul.f32 1.0, %v642
    %v644 = vmul.f32 %v643, 2.0
    %v645 = vsub.f32 %v644, 1.0
    %v646 = vmul.f32 %v643, %v554
    %648 = vrot.lane.b32.xlu0 %v645, 88
    %v649 = vpop.permute.xlu0 %648
    %v651 = vmul.f32 %v643, %v649
    %653 = vrot.lane.b32.xlu0 %v651, 20
    %v654 = vpop.permute.xlu0 %653
    %v656 = vadd.f32 %v646, %v654
    %v657 = vtanh.pop %v656
    %659 = vrot.lane.b32.xlu0 %v657, 40
    %v660 = vpop.permute.xlu0 %659
    %v662 = vmul.f32 %v643, %v660
    %v663 = vld [vmem:[#allocation2 + $0xa] sm:$0x3]
    %665 = vrot.lane.b32.xlu0 %v662, 68
    %v666 = vpop.permute.xlu0 %665
    %v667 = vsel %vm151, %v666, 0
    %669 = vmatprep.subr.mxu0 0.0
    %670 = vmatpush1.msra.mxu0 %v147
    %671 = vmatprep.subr.mxu0 0.0
    %672 = vmatpush1.msra.mxu0 %v148
    %673 = vmatprep.subr.mxu0 0.0
    %674 = vmatpush1.msra.mxu0 %v157
    %675 = vmatprep.subr.mxu0 0.0
    %676 = vmatpush1.msra.mxu0 0.0
    %677 = vmatprep.subr.mxu0 0.0
    %678 = vmatpush1.msra.mxu0 0.0
    %679 = vmatprep.subr.mxu0 0.0
    %680 = vmatpush1.msra.mxu0 0.0
    %681 = vmatprep.subr.mxu0 0.0
    %682 = vmatpush1.msra.mxu0 0.0
    %683 = vmatprep.subr.mxu0 0.0
    %684 = vmatpush1.msra.mxu0 0.0
    %685 = vmatprep.subr.mxu0 0.0
    %686 = vmatpush1.msra.mxu0 0.0
    %687 = vmatprep.subr.mxu0 0.0
    %688 = vmatpush1.msra.mxu0 0.0
    %689 = vmatprep.subr.mxu0 0.0
    %690 = vmatpush1.msra.mxu0 0.0
    %691 = vmatprep.subr.mxu0 0.0
    %692 = vmatpush1.msra.mxu0 0.0
    %693 = vmatprep.subr.mxu0 0.0
    %694 = vmatpush1.msra.mxu0 0.0
    %695 = vmatprep.subr.mxu0 0.0
    %696 = vmatpush1.msra.mxu0 0.0
    %697 = vmatprep.subr.mxu0 0.0
    %698 = vmatpush1.msra.mxu0 0.0
    %699 = vmatprep.subr.mxu0 0.0
    %700 = vmatpush1.msra.mxu0 0.0
    %701 = vmatprep.subr.mxu0 0.0
    %702 = vmatpush1.msra.mxu0 0.0
    %703 = vmatprep.subr.mxu0 0.0
    %704 = vmatpush1.msra.mxu0 0.0
    %705 = vmatprep.subr.mxu0 0.0
    %706 = vmatpush1.msra.mxu0 0.0
    %707 = vmatprep.subr.mxu0 0.0
    %708 = vmatpush1.msra.mxu0 0.0
    %709 = vmatprep.subr.mxu0 0.0
    %710 = vmatpush1.msra.mxu0 0.0
    %711 = vmatprep.subr.mxu0 0.0
    %712 = vmatpush1.msra.mxu0 0.0
    %713 = vmatprep.subr.mxu0 0.0
    %714 = vmatpush1.msra.mxu0 0.0
    %715 = vmatprep.subr.mxu0 0.0
    %716 = vmatpush1.msra.mxu0 0.0
    %717 = vmatprep.subr.mxu0 0.0
    %718 = vmatpush1.msra.mxu0 0.0
    %719 = vmatprep.subr.mxu0 0.0
    %720 = vmatpush1.msra.mxu0 0.0
    %721 = vmatprep.subr.mxu0 0.0
    %722 = vmatpush1.msra.mxu0 0.0
    %723 = vmatprep.subr.mxu0 0.0
    %724 = vmatpush1.msra.mxu0 0.0
    %725 = vmatprep.subr.mxu0 0.0
    %726 = vmatpush1.msra.mxu0 0.0
    %727 = vmatprep.subr.mxu0 0.0
    %728 = vmatpush1.msra.mxu0 0.0
    %729 = vmatprep.subr.mxu0 0.0
    %730 = vmatpush1.msra.mxu0 0.0
    %731 = vmatprep.subr.mxu0 0.0
    %732 = vmatpush1.msra.mxu0 0.0
    %733 = vmatprep.mubr.f32.mxu0 0.0
    %734 = vmatmul.mubr.f32.gmra.mrb[0].mxu0 %v667
    %v735 = vpop.f32.mrb[0].mxu0
    %v736 = vadd.f32 0.0, %v735
    %v737 = vpop.f32.mrb[0].mxu0
    %738 = vdwg.mxu0
    %v739 = vadd.f32 %v663, %v736
    %v740 = vxor.u32 %v739, 2147483648
    %v741 = vmul.f32 %v740, 1.442695
    %v742 = vpow.pop %v741
    %v743 = vadd.f32 %v742, 1.0
    %v744 = vrcp.pop %v743
    %v745 = vmul.f32 1.0, %v744
    %v746 = vmul.f32 %v745, 2.0
    %v747 = vsub.f32 %v746, 1.0
    %v748 = vmul.f32 %v745, %v656
    %750 = vrot.lane.b32.xlu0 %v747, 88
    %v751 = vpop.permute.xlu0 %750
    %v753 = vmul.f32 %v745, %v751
    %755 = vrot.lane.b32.xlu0 %v753, 20
    %v756 = vpop.permute.xlu0 %755
    %v758 = vadd.f32 %v748, %v756
    %v759 = vtanh.pop %v758
    %761 = vrot.lane.b32.xlu0 %v759, 40
    %v762 = vpop.permute.xlu0 %761
    %v764 = vmul.f32 %v745, %v762
    %v765 = vld [vmem:[#allocation2 + $0xc] sm:$0x3]
    %767 = vrot.lane.b32.xlu0 %v764, 68
    %v768 = vpop.permute.xlu0 %767
    %v769 = vsel %vm151, %v768, 0
    %771 = vmatprep.subr.mxu0 0.0
    %772 = vmatpush1.msra.mxu0 %v147
    %773 = vmatprep.subr.mxu0 0.0
    %774 = vmatpush1.msra.mxu0 %v148
    %775 = vmatprep.subr.mxu0 0.0
    %776 = vmatpush1.msra.mxu0 %v157
    %777 = vmatprep.subr.mxu0 0.0
    %778 = vmatpush1.msra.mxu0 0.0
    %779 = vmatprep.subr.mxu0 0.0
    %780 = vmatpush1.msra.mxu0 0.0
    %781 = vmatprep.subr.mxu0 0.0
    %782 = vmatpush1.msra.mxu0 0.0
    %783 = vmatprep.subr.mxu0 0.0
    %784 = vmatpush1.msra.mxu0 0.0
    %785 = vmatprep.subr.mxu0 0.0
    %786 = vmatpush1.msra.mxu0 0.0
    %787 = vmatprep.subr.mxu0 0.0
    %788 = vmatpush1.msra.mxu0 0.0
    %789 = vmatprep.subr.mxu0 0.0
    %790 = vmatpush1.msra.mxu0 0.0
    %791 = vmatprep.subr.mxu0 0.0
    %792 = vmatpush1.msra.mxu0 0.0
    %793 = vmatprep.subr.mxu0 0.0
    %794 = vmatpush1.msra.mxu0 0.0
    %795 = vmatprep.subr.mxu0 0.0
    %796 = vmatpush1.msra.mxu0 0.0
    %797 = vmatprep.subr.mxu0 0.0
    %798 = vmatpush1.msra.mxu0 0.0
    %799 = vmatprep.subr.mxu0 0.0
    %800 = vmatpush1.msra.mxu0 0.0
    %801 = vmatprep.subr.mxu0 0.0
    %802 = vmatpush1.msra.mxu0 0.0
    %803 = vmatprep.subr.mxu0 0.0
    %804 = vmatpush1.msra.mxu0 0.0
    %805 = vmatprep.subr.mxu0 0.0
    %806 = vmatpush1.msra.mxu0 0.0
    %807 = vmatprep.subr.mxu0 0.0
    %808 = vmatpush1.msra.mxu0 0.0
    %809 = vmatprep.subr.mxu0 0.0
    %810 = vmatpush1.msra.mxu0 0.0
    %811 = vmatprep.subr.mxu0 0.0
    %812 = vmatpush1.msra.mxu0 0.0
    %813 = vmatprep.subr.mxu0 0.0
    %814 = vmatpush1.msra.mxu0 0.0
    %815 = vmatprep.subr.mxu0 0.0
    %816 = vmatpush1.msra.mxu0 0.0
    %817 = vmatprep.subr.mxu0 0.0
    %818 = vmatpush1.msra.mxu0 0.0
    %819 = vmatprep.subr.mxu0 0.0
    %820 = vmatpush1.msra.mxu0 0.0
    %821 = vmatprep.subr.mxu0 0.0
    %822 = vmatpush1.msra.mxu0 0.0
    %823 = vmatprep.subr.mxu0 0.0
    %824 = vmatpush1.msra.mxu0 0.0
    %825 = vmatprep.subr.mxu0 0.0
    %826 = vmatpush1.msra.mxu0 0.0
    %827 = vmatprep.subr.mxu0 0.0
    %828 = vmatpush1.msra.mxu0 0.0
    %829 = vmatprep.subr.mxu0 0.0
    %830 = vmatpush1.msra.mxu0 0.0
    %831 = vmatprep.subr.mxu0 0.0
    %832 = vmatpush1.msra.mxu0 0.0
    %833 = vmatprep.subr.mxu0 0.0
    %834 = vmatpush1.msra.mxu0 0.0
    %835 = vmatprep.mubr.f32.mxu0 0.0
    %836 = vmatmul.mubr.f32.gmra.mrb[0].mxu0 %v769
    %v837 = vpop.f32.mrb[0].mxu0
    %v838 = vadd.f32 0.0, %v837
    %v839 = vpop.f32.mrb[0].mxu0
    %840 = vdwg.mxu0
    %v841 = vadd.f32 %v765, %v838
    %v842 = vxor.u32 %v841, 2147483648
    %v843 = vmul.f32 %v842, 1.442695
    %v844 = vpow.pop %v843
    %v845 = vadd.f32 %v844, 1.0
    %v846 = vrcp.pop %v845
    %v847 = vmul.f32 1.0, %v846
    %v848 = vmul.f32 %v847, 2.0
    %v849 = vsub.f32 %v848, 1.0
    %v850 = vmul.f32 %v847, %v758
    %852 = vrot.lane.b32.xlu0 %v849, 88
    %v853 = vpop.permute.xlu0 %852
    %v855 = vmul.f32 %v847, %v853
    %857 = vrot.lane.b32.xlu0 %v855, 20
    %v858 = vpop.permute.xlu0 %857
    %v860 = vadd.f32 %v850, %v858
    %v861 = vtanh.pop %v860
    %863 = vrot.lane.b32.xlu0 %v861, 40
    %v864 = vpop.permute.xlu0 %863
    %v866 = vmul.f32 %v847, %v864
    %v867 = vld [vmem:[#allocation2 + $0xe] sm:$0x3]
    %869 = vrot.lane.b32.xlu0 %v866, 68
    %v870 = vpop.permute.xlu0 %869
    %v871 = vsel %vm151, %v870, 0
    %873 = vmatprep.subr.mxu0 0.0
    %874 = vmatpush1.msra.mxu0 %v147
    %875 = vmatprep.subr.mxu0 0.0
    %876 = vmatpush1.msra.mxu0 %v148
    %877 = vmatprep.subr.mxu0 0.0
    %878 = vmatpush1.msra.mxu0 %v157
    %879 = vmatprep.subr.mxu0 0.0
    %880 = vmatpush1.msra.mxu0 0.0
    %881 = vmatprep.subr.mxu0 0.0
    %882 = vmatpush1.msra.mxu0 0.0
    %883 = vmatprep.subr.mxu0 0.0
    %884 = vmatpush1.msra.mxu0 0.0
    %885 = vmatprep.subr.mxu0 0.0
    %886 = vmatpush1.msra.mxu0 0.0
    %887 = vmatprep.subr.mxu0 0.0
    %888 = vmatpush1.msra.mxu0 0.0
    %889 = vmatprep.subr.mxu0 0.0
    %890 = vmatpush1.msra.mxu0 0.0
    %891 = vmatprep.subr.mxu0 0.0
    %892 = vmatpush1.msra.mxu0 0.0
    %893 = vmatprep.subr.mxu0 0.0
    %894 = vmatpush1.msra.mxu0 0.0
    %895 = vmatprep.subr.mxu0 0.0
    %896 = vmatpush1.msra.mxu0 0.0
    %897 = vmatprep.subr.mxu0 0.0
    %898 = vmatpush1.msra.mxu0 0.0
    %899 = vmatprep.subr.mxu0 0.0
    %900 = vmatpush1.msra.mxu0 0.0
    %901 = vmatprep.subr.mxu0 0.0
    %902 = vmatpush1.msra.mxu0 0.0
    %903 = vmatprep.subr.mxu0 0.0
    %904 = vmatpush1.msra.mxu0 0.0
    %905 = vmatprep.subr.mxu0 0.0
    %906 = vmatpush1.msra.mxu0 0.0
    %907 = vmatprep.subr.mxu0 0.0
    %908 = vmatpush1.msra.mxu0 0.0
    %909 = vmatprep.subr.mxu0 0.0
    %910 = vmatpush1.msra.mxu0 0.0
    %911 = vmatprep.subr.mxu0 0.0
    %912 = vmatpush1.msra.mxu0 0.0
    %913 = vmatprep.subr.mxu0 0.0
    %914 = vmatpush1.msra.mxu0 0.0
    %915 = vmatprep.subr.mxu0 0.0
    %916 = vmatpush1.msra.mxu0 0.0
    %917 = vmatprep.subr.mxu0 0.0
    %918 = vmatpush1.msra.mxu0 0.0
    %919 = vmatprep.subr.mxu0 0.0
    %920 = vmatpush1.msra.mxu0 0.0
    %921 = vmatprep.subr.mxu0 0.0
    %922 = vmatpush1.msra.mxu0 0.0
    %923 = vmatprep.subr.mxu0 0.0
    %924 = vmatpush1.msra.mxu0 0.0
    %925 = vmatprep.subr.mxu0 0.0
    %926 = vmatpush1.msra.mxu0 0.0
    %927 = vmatprep.subr.mxu0 0.0
    %928 = vmatpush1.msra.mxu0 0.0
    %929 = vmatprep.subr.mxu0 0.0
    %930 = vmatpush1.msra.mxu0 0.0
    %931 = vmatprep.subr.mxu0 0.0
    %932 = vmatpush1.msra.mxu0 0.0
    %933 = vmatprep.subr.mxu0 0.0
    %934 = vmatpush1.msra.mxu0 0.0
    %935 = vmatprep.subr.mxu0 0.0
    %936 = vmatpush1.msra.mxu0 0.0
    %937 = vmatprep.mubr.f32.mxu0 0.0
    %938 = vmatmul.mubr.f32.gmra.mrb[0].mxu0 %v871
    %v939 = vpop.f32.mrb[0].mxu0
    %v940 = vadd.f32 0.0, %v939
    %v941 = vpop.f32.mrb[0].mxu0
    %942 = vdwg.mxu0
    %v943 = vadd.f32 %v867, %v940
    %v944 = vxor.u32 %v943, 2147483648
    %v945 = vmul.f32 %v944, 1.442695
    %v946 = vpow.pop %v945
    %v947 = vadd.f32 %v946, 1.0
    %v948 = vrcp.pop %v947
    %v949 = vmul.f32 1.0, %v948
    %v950 = vmul.f32 %v949, 2.0
    %v951 = vsub.f32 %v950, 1.0
    %v952 = vmul.f32 %v949, %v860
    %954 = vrot.lane.b32.xlu0 %v951, 88
    %v955 = vpop.permute.xlu0 %954
    %v957 = vmul.f32 %v949, %v955
    %959 = vrot.lane.b32.xlu0 %v957, 20
    %v960 = vpop.permute.xlu0 %959
    %v962 = vadd.f32 %v952, %v960
    %v963 = vtanh.pop %v962
    %965 = vrot.lane.b32.xlu0 %v963, 40
    %v966 = vpop.permute.xlu0 %965
    %v968 = vmul.f32 %v949, %v966
    %v969 = vmax.f32 %v968, 0.0
    %v970 = vld [vmem:[%s4] sm:$0xff]
    %v971 = vld [vmem:[%s4 + $0x8] sm:$0xff]
    %v972 = vld [vmem:[%s4 + $0x10] sm:$0xf]
    %v973 = vld [vmem:[%s5] sm:$0x1]
    %v975 = vlaneseq
    %v976 = vshrl.u32 %v975, 7
    %v977 = vsub.s32 0, %v976
    %v978 = vrot.slane %v973, %v977
    %981 = vrot.lane.b32.xlu0 %v969, 68
    %v982 = vpop.permute.xlu0 %981
    %v983 = vsel %vm151, %v982, 0
    %v986 = vsel %vm155, %v972, 0
    %988 = vmatprep.subr.mxu0 0.0
    %989 = vmatpush1.msra.mxu0 %v970
    %990 = vmatprep.subr.mxu0 0.0
    %991 = vmatpush1.msra.mxu0 %v971
    %992 = vmatprep.subr.mxu0 0.0
    %993 = vmatpush1.msra.mxu0 %v986
    %994 = vmatprep.subr.mxu0 0.0
    %995 = vmatpush1.msra.mxu0 0.0
    %996 = vmatprep.subr.mxu0 0.0
    %997 = vmatpush1.msra.mxu0 0.0
    %998 = vmatprep.subr.mxu0 0.0
    %999 = vmatpush1.msra.mxu0 0.0
    %1000 = vmatprep.subr.mxu0 0.0
    %1001 = vmatpush1.msra.mxu0 0.0
    %1002 = vmatprep.subr.mxu0 0.0
    %1003 = vmatpush1.msra.mxu0 0.0
    %1004 = vmatprep.subr.mxu0 0.0
    %1005 = vmatpush1.msra.mxu0 0.0
    %1006 = vmatprep.subr.mxu0 0.0
    %1007 = vmatpush1.msra.mxu0 0.0
    %1008 = vmatprep.subr.mxu0 0.0
    %1009 = vmatpush1.msra.mxu0 0.0
    %1010 = vmatprep.subr.mxu0 0.0
    %1011 = vmatpush1.msra.mxu0 0.0
    %1012 = vmatprep.subr.mxu0 0.0
    %1013 = vmatpush1.msra.mxu0 0.0
    %1014 = vmatprep.subr.mxu0 0.0
    %1015 = vmatpush1.msra.mxu0 0.0
    %1016 = vmatprep.subr.mxu0 0.0
    %1017 = vmatpush1.msra.mxu0 0.0
    %1018 = vmatprep.subr.mxu0 0.0
    %1019 = vmatpush1.msra.mxu0 0.0
    %1020 = vmatprep.subr.mxu0 0.0
    %1021 = vmatpush1.msra.mxu0 0.0
    %1022 = vmatprep.subr.mxu0 0.0
    %1023 = vmatpush1.msra.mxu0 0.0
    %1024 = vmatprep.subr.mxu0 0.0
    %1025 = vmatpush1.msra.mxu0 0.0
    %1026 = vmatprep.subr.mxu0 0.0
    %1027 = vmatpush1.msra.mxu0 0.0
    %1028 = vmatprep.subr.mxu0 0.0
    %1029 = vmatpush1.msra.mxu0 0.0
    %1030 = vmatprep.subr.mxu0 0.0
    %1031 = vmatpush1.msra.mxu0 0.0
    %1032 = vmatprep.subr.mxu0 0.0
    %1033 = vmatpush1.msra.mxu0 0.0
    %1034 = vmatprep.subr.mxu0 0.0
    %1035 = vmatpush1.msra.mxu0 0.0
    %1036 = vmatprep.subr.mxu0 0.0
    %1037 = vmatpush1.msra.mxu0 0.0
    %1038 = vmatprep.subr.mxu0 0.0
    %1039 = vmatpush1.msra.mxu0 0.0
    %1040 = vmatprep.subr.mxu0 0.0
    %1041 = vmatpush1.msra.mxu0 0.0
    %1042 = vmatprep.subr.mxu0 0.0
    %1043 = vmatpush1.msra.mxu0 0.0
    %1044 = vmatprep.subr.mxu0 0.0
    %1045 = vmatpush1.msra.mxu0 0.0
    %1046 = vmatprep.subr.mxu0 0.0
    %1047 = vmatpush1.msra.mxu0 0.0
    %1048 = vmatprep.subr.mxu0 0.0
    %1049 = vmatpush1.msra.mxu0 0.0
    %1050 = vmatprep.subr.mxu0 0.0
    %1051 = vmatpush1.msra.mxu0 0.0
    %1052 = vmatprep.mubr.f32.mxu0 0.0
    %1053 = vmatmul.mubr.f32.gmra.mrb[0].mxu0 %v983
    %v1054 = vpop.f32.mrb[0].mxu0
    %v1055 = vadd.f32 %v978, %v1054
    %v1056 = vpop.f32.mrb[0].mxu0
    %1057 = vdwg.mxu0
    %v1058 = vmax.f32 %v1055, 0.0
    %v1059 = vld [vmem:[%s6] sm:$0xff]
    %v1060 = vld [vmem:[%s6 + $0x8] sm:$0xff]
    %v1061 = vld [vmem:[%s6 + $0x10] sm:$0xff]
    %v1062 = vld [vmem:[%s6 + $0x18] sm:$0xff]
    %v1063 = vld [vmem:[%s6 + $0x20] sm:$0xff]
    %v1064 = vld [vmem:[%s6 + $0x28] sm:$0xff]
    %v1065 = vld [vmem:[%s6 + $0x30] sm:$0xff]
    %v1066 = vld [vmem:[%s6 + $0x38] sm:$0xff]
    %v1067 = vld [vmem:[%s7] sm:$0x1]
    %v1069 = vlaneseq
    %v1070 = vshrl.u32 %v1069, 7
    %v1071 = vsub.s32 0, %v1070
    %v1072 = vrot.slane %v1067, %v1071
    %vm1074 = vcmask 523264
    %v1076 = vsel %vm1074, %v1058, 0
    %1078 = vmatprep.subr.mxu0 0.0
    %1079 = vmatpush1.msra.mxu0 %v1059
    %1080 = vmatprep.subr.mxu0 0.0
    %1081 = vmatpush1.msra.mxu0 %v1060
    %1082 = vmatprep.subr.mxu0 0.0
    %1083 = vmatpush1.msra.mxu0 %v1061
    %1084 = vmatprep.subr.mxu0 0.0
    %1085 = vmatpush1.msra.mxu0 %v1062
    %1086 = vmatprep.subr.mxu0 0.0
    %1087 = vmatpush1.msra.mxu0 %v1063
    %1088 = vmatprep.subr.mxu0 0.0
    %1089 = vmatpush1.msra.mxu0 %v1064
    %1090 = vmatprep.subr.mxu0 0.0
    %1091 = vmatpush1.msra.mxu0 %v1065
    %1092 = vmatprep.subr.mxu0 0.0
    %1093 = vmatpush1.msra.mxu0 %v1066
    %1094 = vmatprep.subr.mxu0 0.0
    %1095 = vmatpush1.msra.mxu0 0.0
    %1096 = vmatprep.subr.mxu0 0.0
    %1097 = vmatpush1.msra.mxu0 0.0
    %1098 = vmatprep.subr.mxu0 0.0
    %1099 = vmatpush1.msra.mxu0 0.0
    %1100 = vmatprep.subr.mxu0 0.0
    %1101 = vmatpush1.msra.mxu0 0.0
    %1102 = vmatprep.subr.mxu0 0.0
    %1103 = vmatpush1.msra.mxu0 0.0
    %1104 = vmatprep.subr.mxu0 0.0
    %1105 = vmatpush1.msra.mxu0 0.0
    %1106 = vmatprep.subr.mxu0 0.0
    %1107 = vmatpush1.msra.mxu0 0.0
    %1108 = vmatprep.subr.mxu0 0.0
    %1109 = vmatpush1.msra.mxu0 0.0
    %1110 = vmatprep.subr.mxu0 0.0
    %1111 = vmatpush1.msra.mxu0 0.0
    %1112 = vmatprep.subr.mxu0 0.0
    %1113 = vmatpush1.msra.mxu0 0.0
    %1114 = vmatprep.subr.mxu0 0.0
    %1115 = vmatpush1.msra.mxu0 0.0
    %1116 = vmatprep.subr.mxu0 0.0
    %1117 = vmatpush1.msra.mxu0 0.0
    %1118 = vmatprep.subr.mxu0 0.0
    %1119 = vmatpush1.msra.mxu0 0.0
    %1120 = vmatprep.subr.mxu0 0.0
    %1121 = vmatpush1.msra.mxu0 0.0
    %1122 = vmatprep.subr.mxu0 0.0
    %1123 = vmatpush1.msra.mxu0 0.0
    %1124 = vmatprep.subr.mxu0 0.0
    %1125 = vmatpush1.msra.mxu0 0.0
    %1126 = vmatprep.subr.mxu0 0.0
    %1127 = vmatpush1.msra.mxu0 0.0
    %1128 = vmatprep.subr.mxu0 0.0
    %1129 = vmatpush1.msra.mxu0 0.0
    %1130 = vmatprep.subr.mxu0 0.0
    %1131 = vmatpush1.msra.mxu0 0.0
    %1132 = vmatprep.subr.mxu0 0.0
    %1133 = vmatpush1.msra.mxu0 0.0
    %1134 = vmatprep.subr.mxu0 0.0
    %1135 = vmatpush1.msra.mxu0 0.0
    %1136 = vmatprep.subr.mxu0 0.0
    %1137 = vmatpush1.msra.mxu0 0.0
    %1138 = vmatprep.subr.mxu0 0.0
    %1139 = vmatpush1.msra.mxu0 0.0
    %1140 = vmatprep.subr.mxu0 0.0
    %1141 = vmatpush1.msra.mxu0 0.0
    %1142 = vmatprep.mubr.f32.mxu0 0.0
    %1143 = vmatmul.mubr.f32.gmra.mrb[0].mxu0 %v1076
    %v1144 = vpop.f32.mrb[0].mxu0
    %v1145 = vadd.f32 %v1072, %v1144
    %v1146 = vpop.f32.mrb[0].mxu0
    %1147 = vdwg.mxu0
    %v1148 = vmax.f32 %v1145, 0.0
    %v1149 = vld [vmem:[%s8] sm:$0xff]
    %v1150 = vld [vmem:[%s8 + $0x8] sm:$0xff]
    %v1151 = vld [vmem:[%s8 + $0x10] sm:$0xff]
    %v1152 = vld [vmem:[%s8 + $0x18] sm:$0xff]
    %v1153 = vld [vmem:[%s9] sm:$0x1]
    %v1155 = vlaneseq
    %v1156 = vshrl.u32 %v1155, 7
    %v1157 = vsub.s32 0, %v1156
    %v1158 = vrot.slane %v1153, %v1157
    %vm1160 = vcmask 261120
    %v1162 = vsel %vm1160, %v1148, 0
    %1164 = vmatprep.subr.mxu0 0.0
    %1165 = vmatpush1.msra.mxu0 %v1149
    %1166 = vmatprep.subr.mxu0 0.0
    %1167 = vmatpush1.msra.mxu0 %v1150
    %1168 = vmatprep.subr.mxu0 0.0
    %1169 = vmatpush1.msra.mxu0 %v1151
    %1170 = vmatprep.subr.mxu0 0.0
    %1171 = vmatpush1.msra.mxu0 %v1152
    %1172 = vmatprep.subr.mxu0 0.0
    %1173 = vmatpush1.msra.mxu0 0.0
    %1174 = vmatprep.subr.mxu0 0.0
    %1175 = vmatpush1.msra.mxu0 0.0
    %1176 = vmatprep.subr.mxu0 0.0
    %1177 = vmatpush1.msra.mxu0 0.0
    %1178 = vmatprep.subr.mxu0 0.0
    %1179 = vmatpush1.msra.mxu0 0.0
    %1180 = vmatprep.subr.mxu0 0.0
    %1181 = vmatpush1.msra.mxu0 0.0
    %1182 = vmatprep.subr.mxu0 0.0
    %1183 = vmatpush1.msra.mxu0 0.0
    %1184 = vmatprep.subr.mxu0 0.0
    %1185 = vmatpush1.msra.mxu0 0.0
    %1186 = vmatprep.subr.mxu0 0.0
    %1187 = vmatpush1.msra.mxu0 0.0
    %1188 = vmatprep.subr.mxu0 0.0
    %1189 = vmatpush1.msra.mxu0 0.0
    %1190 = vmatprep.subr.mxu0 0.0
    %1191 = vmatpush1.msra.mxu0 0.0
    %1192 = vmatprep.subr.mxu0 0.0
    %1193 = vmatpush1.msra.mxu0 0.0
    %1194 = vmatprep.subr.mxu0 0.0
    %1195 = vmatpush1.msra.mxu0 0.0
    %1196 = vmatprep.subr.mxu0 0.0
    %1197 = vmatpush1.msra.mxu0 0.0
    %1198 = vmatprep.subr.mxu0 0.0
    %1199 = vmatpush1.msra.mxu0 0.0
    %1200 = vmatprep.subr.mxu0 0.0
    %1201 = vmatpush1.msra.mxu0 0.0
    %1202 = vmatprep.subr.mxu0 0.0
    %1203 = vmatpush1.msra.mxu0 0.0
    %1204 = vmatprep.subr.mxu0 0.0
    %1205 = vmatpush1.msra.mxu0 0.0
    %1206 = vmatprep.subr.mxu0 0.0
    %1207 = vmatpush1.msra.mxu0 0.0
    %1208 = vmatprep.subr.mxu0 0.0
    %1209 = vmatpush1.msra.mxu0 0.0
    %1210 = vmatprep.subr.mxu0 0.0
    %1211 = vmatpush1.msra.mxu0 0.0
    %1212 = vmatprep.subr.mxu0 0.0
    %1213 = vmatpush1.msra.mxu0 0.0
    %1214 = vmatprep.subr.mxu0 0.0
    %1215 = vmatpush1.msra.mxu0 0.0
    %1216 = vmatprep.subr.mxu0 0.0
    %1217 = vmatpush1.msra.mxu0 0.0
    %1218 = vmatprep.subr.mxu0 0.0
    %1219 = vmatpush1.msra.mxu0 0.0
    %1220 = vmatprep.subr.mxu0 0.0
    %1221 = vmatpush1.msra.mxu0 0.0
    %1222 = vmatprep.subr.mxu0 0.0
    %1223 = vmatpush1.msra.mxu0 0.0
    %1224 = vmatprep.subr.mxu0 0.0
    %1225 = vmatpush1.msra.mxu0 0.0
    %1226 = vmatprep.subr.mxu0 0.0
    %1227 = vmatpush1.msra.mxu0 0.0
    %1228 = vmatprep.mubr.f32.mxu0 0.0
    %1229 = vmatmul.mubr.f32.gmra.mrb[0].mxu0 %v1162
    %v1230 = vpop.f32.mrb[0].mxu0
    %v1231 = vadd.f32 %v1158, %v1230
    %v1232 = vpop.f32.mrb[0].mxu0
    %1233 = vdwg.mxu0
    %vm1234 = vcmask 33792
    %1235 = vst.msk [vmem:[#allocation3] sm:$0x3] %vm1234, %v1231
    // Predicated region
    $region42: #{tpu_custom_call.1} parent=1 // pred_check
      _
    $region43: #{tpu_custom_call.1} parent=1 // pred_check_branch
      %1237 = sbr.rel (0) target = $region45
    $region44: #{tpu_custom_call.1} parent=1 // pred_region
      %s1239 = ssub.s32 32, 32
      %1240 = vsyncadd [#allocation4], %s1239
      %s1242 = sshll.u32 [#allocation3], 4
      %s1243 = int_to_ptr.vmem [resolvable:$true] %s1242
      %1245 = dma.vmem_to_hbm [thread:$0]  %s1243, 32, %s10, [#allocation4]
    $region45: #{tpu_custom_call.1} parent=1 // pred_fallthru
      _
    // Predicated region
    $region46: #{tpu_custom_call.1} parent=1 // pred_check
      _
    $region47: #{tpu_custom_call.1} parent=1 // pred_check_branch
      %1247 = sbr.rel (0) target = $region49
    $region48: #{tpu_custom_call.1} parent=1 // pred_region
      %1248 = dma.done [#allocation4], 32
    $region49: #{tpu_custom_call.1} parent=1 // pred_fallthru
      _
    %1249 = vsyncpa [#allocation4], 1

</llo_original>
